<compile_context>
chip_gen: v7x
topology: tpu7x:2x2x1
jax: 0.10.0
libtpu: 0.0.40
codegen_flags: <defaults>
</compile_context>

<pallas_src>
import numpy as np
import jax
import jax.numpy as jnp
from jax.experimental import pallas as pl
from jax.experimental.pallas import tpu as pltpu

NEG_SLOPE = 0.01  # nn.LeakyReLU() default


def _leaky(z):
    # max(z, 0.01*z) == LeakyReLU(0.01): one vmul + vmax (no cmp/select).
    return jnp.maximum(z, NEG_SLOPE * z)


# ----------------------------------------------------------------------------
# Pallas kernel (one grid step == TS systems, weights VMEM-resident)
# ----------------------------------------------------------------------------
def _make_kernel(n_emb, n_fit, Emax, Lmax, TS, N):
    def kernel(x_ref, mask_ref, w_e0_ref, w_e_ref, b_e_ref,
               w_f0_ref, w_f_ref, b_f_ref, w_out_ref, b_out_ref, out_ref):
        x3 = x_ref[...]                        # (TS, N, 3)
        xf = x3.reshape(TS * N, 3)             # all atoms of all systems

        # ---- merged (block-diagonal) embedding nets: one matmul per layer ----
        h = _leaky(jnp.dot(xf, w_e0_ref[...],
                           preferred_element_type=jnp.float32) + b_e_ref[0:1, :])
        for l in range(1, n_emb):
            h = _leaky(jnp.dot(h, w_e_ref[l - 1],
                               preferred_element_type=jnp.float32)
                       + b_e_ref[l:l + 1, :])                   # (TS*N, 3*Emax)

        # ---- per-atom net selection (static one-hot, lane-expanded mask) ----
        gm = h * mask_ref[...]                                  # (TS*N, 3*Emax)
        g = (gm[:, 0:Emax]
             + gm[:, Emax:2 * Emax]
             + gm[:, 2 * Emax:3 * Emax])                        # (TS*N, Emax)
        g3 = g.reshape(TS, N, Emax)                             # (TS, N, Emax)

        # ---- symmetric descriptor fused with first fitting layer ----
        # t_c[b, e] = sum_n x[b, n, c] * g[b, n, e]  ( == (g^T x) column c )
        acc = b_f_ref[0:1, :]                                   # (1, Lmax)
        for c in range(3):
            t_c = jnp.sum(x3[:, :, c:c + 1] * g3, axis=1)       # (TS, Emax)
            acc = acc + jnp.dot(t_c, w_f0_ref[c],
                                preferred_element_type=jnp.float32)
        h = _leaky(acc)                                         # (TS, Lmax)

        # ---- remaining fitting layers ----
        for l in range(1, n_fit):
            h = _leaky(jnp.dot(h, w_f_ref[l - 1],
                               preferred_element_type=jnp.float32)
                       + b_f_ref[l:l + 1, :])

        # ---- output layer (no activation) ----
        out_ref[...] = (jnp.dot(h, w_out_ref[...],
                                preferred_element_type=jnp.float32)
                        + b_out_ref[...])                       # (TS, 3)

    return kernel


# ----------------------------------------------------------------------------
# Host-side one-time parameter packing (done once, outside the per-call path)
# ----------------------------------------------------------------------------
def _pack_params(params, atom, atom_list, embedding_dim, linear_layers, TS):
    N = len(atom_list)
    n_emb = len(embedding_dim)
    n_fit = len(linear_layers)
    Emax = max(embedding_dim)
    Lmax = max(linear_layers)
    E = embedding_dim[-1]
    E3 = 3 * Emax
    to_np = lambda a: np.asarray(a, np.float32)
    nets = ("embed1", "embed2", "embed12")

    # embedding layer 0: concat along lanes; later layers: block-diagonal.
    w_e0 = np.zeros((3, E3), np.float32)
    b_e = np.zeros((n_emb, E3), np.float32)
    for k, net in enumerate(nets):
        W, b = map(to_np, params[net][0])              # W: (E0, 3), b: (E0,)
        w_e0[:, k * Emax:k * Emax + W.shape[0]] = W.T
        b_e[0, k * Emax:k * Emax + b.shape[0]] = b
    w_e = np.zeros((max(n_emb - 1, 1), E3, E3), np.float32)
    for l in range(1, n_emb):
        for k, net in enumerate(nets):
            W, b = map(to_np, params[net][l])          # W: (E_l, E_{l-1})
            w_e[l - 1,
                k * Emax:k * Emax + W.shape[1],
                k * Emax:k * Emax + W.shape[0]] = W.T
            b_e[l, k * Emax:k * Emax + b.shape[0]] = b

    # fitting layer 0: torch flattens (g^T x) row-major -> flat index = e*3 + c
    fit = params["fit"]
    W1, b1 = map(to_np, fit[0])                        # (L0, 3E), (L0,)
    L0 = W1.shape[0]
    W1r = W1.reshape(L0, E, 3).transpose(2, 1, 0)      # (3, E, L0)
    w_f0 = np.zeros((3, Emax, Lmax), np.float32)
    w_f0[:, :E, :L0] = W1r
    b_f = np.zeros((n_fit, Lmax), np.float32)
    b_f[0, :L0] = b1
    w_f = np.zeros((max(n_fit - 1, 1), Lmax, Lmax), np.float32)
    for l in range(1, n_fit):
        W, b = map(to_np, fit[l])                      # (L_l, L_{l-1})
        w_f[l - 1, :W.shape[1], :W.shape[0]] = W.T
        b_f[l, :b.shape[0]] = b

    Wout, bout = map(to_np, params["out"])             # (3, L_last), (3,)
    w_out = np.zeros((Lmax, 3), np.float32)
    w_out[:Wout.shape[1], :] = Wout.T
    b_out = bout.reshape(1, 3)

    # static one-hot net selector (replica of torch if/elif/else), lane-expanded
    # to 3*Emax and tiled over the TS systems of one grid step.
    sel = np.zeros((N, 3), np.float32)
    for i, a in enumerate(atom_list):
        if atom == 1 and a == 1:
            sel[i, 0] = 1.0
        elif atom == 2 and a == 2:
            sel[i, 1] = 1.0
        else:
            sel[i, 2] = 1.0
    maskf = np.tile(np.repeat(sel, Emax, axis=1), (TS, 1))   # (TS*N, 3*Emax)

    packed = dict(maskf=maskf, w_e0=w_e0, w_e=w_e, b_e=b_e,
                  w_f0=w_f0, w_f=w_f, b_f=b_f, w_out=w_out, b_out=b_out)
    return {k: jnp.asarray(v) for k, v in packed.items()}


# ----------------------------------------------------------------------------
# Forward builder: packs params + builds the kernel ONCE, returns jitted callables
# ----------------------------------------------------------------------------
def make_dnn_sym_forward(atom, atom_list, embedding_dim, linear_layers, params,
                         tile_systems=8):
    N = len(atom_list)
    n_emb = len(embedding_dim)
    n_fit = len(linear_layers)
    Emax = max(embedding_dim)
    Lmax = max(linear_layers)
    TS = tile_systems
    E3 = 3 * Emax

    packed = _pack_params(params, atom, atom_list, embedding_dim, linear_layers, TS)
    kernel = _make_kernel(n_emb, n_fit, Emax, Lmax, TS, N)

    param_order = ("maskf", "w_e0", "w_e", "b_e",
                   "w_f0", "w_f", "b_f", "w_out", "b_out")
    param_args = [packed[k] for k in param_order]

    def _const_spec(shape):
        # constant index_map: DMA'd once, stays VMEM-resident across grid steps
        return pl.BlockSpec(shape, lambda i: (0,) * len(shape))

    param_specs = [_const_spec(packed[k].shape) for k in param_order]
    bytes_params = sum(int(np.prod(packed[k].shape)) * 4 for k in param_order)

    def _run(xs_padded):                       # (S_pad, N, 3), S_pad % TS == 0
        s_pad = xs_padded.shape[0]
        grid = (s_pad // TS,)
        flops_per_tile = (2 * TS * N * 3 * E3
                          + (n_emb - 1) * 2 * TS * N * E3 * E3
                          + 2 * TS * N * 3 * Emax
                          + 3 * 2 * TS * Emax * Lmax
                          + (n_fit - 1) * 2 * TS * Lmax * Lmax
                          + 2 * TS * Lmax * 3)
        cost = pl.CostEstimate(
            flops=int(flops_per_tile * grid[0]),
            transcendentals=0,
            bytes_accessed=int(xs_padded.size * 4 + s_pad * 3 * 4 + bytes_params))
        return pl.pallas_call(
            kernel,
            out_shape=jax.ShapeDtypeStruct((s_pad, 3), jnp.float32),
            grid=grid,
            in_specs=[pl.BlockSpec((TS, N, 3), lambda i: (i, 0, 0))] + param_specs,
            out_specs=pl.BlockSpec((TS, 3), lambda i: (i, 0)),
            compiler_params=pltpu.CompilerParams(
                dimension_semantics=("parallel",)),
            cost_estimate=cost,
        )(xs_padded, *param_args)

    @jax.jit
    def forward_batch(xs):                     # (S, N, 3) -> (S, 3)
        xs = xs.astype(jnp.float32)
        s = xs.shape[0]
        s_pad = ((s + TS - 1) // TS) * TS
        if s_pad != s:
            xs = jnp.concatenate(
                [xs, jnp.zeros((s_pad - s, N, 3), jnp.float32)], axis=0)
        return _run(xs)[:s]

    def forward_one(x):                        # (N, 3) -> (3,)  (original semantics)
        return forward_batch(x[None])[0]

    return forward_batch, forward_one


# ----------------------------------------------------------------------------
# Deterministic parameter init (PyTorch-style uniform +/- 1/sqrt(fan_in))
# ----------------------------------------------------------------------------
def init_linear(key, fan_in, fan_out):
    k1, k2 = jax.random.split(key)
    bound = 1.0 / np.sqrt(fan_in)
    W = jax.random.uniform(k1, (fan_out, fan_in), jnp.float32, -bound, bound)
    b = jax.random.uniform(k2, (fan_out,), jnp.float32, -bound, bound)
    return W, b


def init_params(key, embedding_dim, linear_layers):
    params = {}
    dims_e = [3] + list(embedding_dim)
    for net in ("embed1", "embed2", "embed12"):
        layers = []
        for i in range(len(dims_e) - 1):
            key, sub = jax.random.split(key)
            layers.append(init_linear(sub, dims_e[i], dims_e[i + 1]))
        params[net] = layers
    dims_f = [embedding_dim[-1] * 3] + list(linear_layers)
    fit = []
    for i in range(len(dims_f) - 1):
        key, sub = jax.random.split(key)
        fit.append(init_linear(sub, dims_f[i], dims_f[i + 1]))
    params["fit"] = fit
    key, sub = jax.random.split(key)
    params["out"] = init_linear(sub, linear_layers[-1], 3)
    return params


# ----------------------------------------------------------------------------
# Pure-JAX reference (direct transcription of the torch forward, per system)
# ----------------------------------------------------------------------------
def ref_forward(x, atom, atom_list, params):
    def mlp(h, layers):
        for W, b in layers:
            h = jnp.where(h @ W.T + b >= 0, h @ W.T + b, NEG_SLOPE * (h @ W.T + b))
        return h

    rows = []
    for i, a in enumerate(atom_list):
        if atom == 1 and a == 1:
            net = "embed1"
        elif atom == 2 and a == 2:
            net = "embed2"
        else:
            net = "embed12"
        rows.append(mlp(x[i], params[net]))
    g = jnp.stack(rows, 0)                      # (N, E)
    h = (g.T @ x).reshape(-1)                   # (3E,) row-major: e*3 + c
    for W, b in params["fit"]:
        z = h @ W.T + b
        h = jnp.where(z >= 0, z, NEG_SLOPE * z)
    Wout, bout = params["out"]
    return h @ Wout.T + bout                    # (3,)


if __name__ == "__main__":
    embedding_dim = [32, 32]
    linear_layers = [32, 32]
    atom = 1
    atom_list = [1, 2, 2, 1, 1, 2, 1, 2]
    N = len(atom_list)
    S = 16          # systems evaluated in one pallas_call (grid of 2 parallel tiles)
    TS = 8          # systems per grid step

    key = jax.random.PRNGKey(0)
    k_x, k_p = jax.random.split(key)
    xs = jax.random.normal(k_x, (S, N, 3), jnp.float32)
    params = init_params(k_p, embedding_dim, linear_layers)

    forward_batch, forward_one = make_dnn_sym_forward(
        atom, atom_list, embedding_dim, linear_layers, params, tile_systems=TS)

    out = jax.block_until_ready(forward_batch(xs))            # (S, 3)
    one = jax.block_until_ready(forward_one(xs[0]))           # (3,) original semantics

    ref = jnp.stack([ref_forward(xs[i], atom, atom_list, params) for i in range(S)])
    assert out.shape == (S, 3) and one.shape == (3,)
    np.testing.assert_allclose(np.asarray(out), np.asarray(ref), atol=5e-4, rtol=5e-4)
    np.testing.assert_allclose(np.asarray(one), np.asarray(ref[0]), atol=5e-4, rtol=5e-4)
    print("KERNEL_OK")
</pallas_src>

<mosaic_0001>
module attributes {stable_mosaic.version = 11 : i64} {
  func.func @kernel(%arg0: i32, %arg1: memref<8x8x3xf32, #tpu.memory_space<vmem>>, %arg2: memref<64x96xf32, #tpu.memory_space<vmem>>, %arg3: memref<3x96xf32, #tpu.memory_space<vmem>>, %arg4: memref<1x96x96xf32, #tpu.memory_space<vmem>>, %arg5: memref<2x96xf32, #tpu.memory_space<vmem>>, %arg6: memref<3x32x32xf32, #tpu.memory_space<vmem>>, %arg7: memref<1x32x32xf32, #tpu.memory_space<vmem>>, %arg8: memref<2x32xf32, #tpu.memory_space<vmem>>, %arg9: memref<32x3xf32, #tpu.memory_space<vmem>>, %arg10: memref<1x3xf32, #tpu.memory_space<vmem>>, %arg11: memref<8x3xf32, #tpu.memory_space<vmem>>) attributes {dimension_semantics = [#tpu.dimension_semantics<parallel>], iteration_bounds = array<i64: 2>, scalar_prefetch = 0 : i64, scratch_operands = 0 : i64, tpu.core_type = #tpu.core_type<tc>, window_params = [{transform_indices = @transform_0, window_bounds = array<i64: 8, 8, 3>}, {pipeline_mode = #tpu.pipeline_mode<synchronous>, transform_indices = @transform_1, window_bounds = array<i64: 64, 96>}, {pipeline_mode = #tpu.pipeline_mode<synchronous>, transform_indices = @transform_2, window_bounds = array<i64: 3, 96>}, {pipeline_mode = #tpu.pipeline_mode<synchronous>, transform_indices = @transform_3, window_bounds = array<i64: 1, 96, 96>}, {pipeline_mode = #tpu.pipeline_mode<synchronous>, transform_indices = @transform_4, window_bounds = array<i64: 2, 96>}, {pipeline_mode = #tpu.pipeline_mode<synchronous>, transform_indices = @transform_5, window_bounds = array<i64: 3, 32, 32>}, {pipeline_mode = #tpu.pipeline_mode<synchronous>, transform_indices = @transform_6, window_bounds = array<i64: 1, 32, 32>}, {pipeline_mode = #tpu.pipeline_mode<synchronous>, transform_indices = @transform_7, window_bounds = array<i64: 2, 32>}, {pipeline_mode = #tpu.pipeline_mode<synchronous>, transform_indices = @transform_8, window_bounds = array<i64: 32, 3>}, {pipeline_mode = #tpu.pipeline_mode<synchronous>, transform_indices = @transform_9, window_bounds = array<i64: 1, 3>}, {transform_indices = @transform_10, window_bounds = array<i64: 8, 3>}]} {
    %c0 = arith.constant 0 : index
    %c0_0 = arith.constant 0 : index
    %c0_1 = arith.constant 0 : index
    %0 = vector.load %arg1[%c0, %c0_0, %c0_1] : memref<8x8x3xf32, #tpu.memory_space<vmem>>, vector<8x8x3xf32>
    %1 = vector.shape_cast %0 : vector<8x8x3xf32> to vector<64x3xf32>
    %c0_2 = arith.constant 0 : index
    %c0_3 = arith.constant 0 : index
    %2 = vector.load %arg3[%c0_2, %c0_3] : memref<3x96xf32, #tpu.memory_space<vmem>>, vector<3x96xf32>
    %cst = arith.constant dense<0.000000e+00> : vector<64x96xf32>
    %3 = tpu.matmul %1, %2, %cst {dimension_numbers = #tpu.dot_dimension_numbers<[1], [0], [0], [1], [0, 0, 1, 1], [], []>} : vector<64x3xf32>, vector<3x96xf32>, vector<64x96xf32> -> vector<64x96xf32>
    %c0_4 = arith.constant 0 : index
    %c0_5 = arith.constant 0 : index
    %4 = vector.load %arg5[%c0_4, %c0_5] : memref<2x96xf32, #tpu.memory_space<vmem>>, vector<1x96xf32>
    %5 = vector.broadcast %4 : vector<1x96xf32> to vector<64x96xf32>
    %6 = arith.addf %3, %5 : vector<64x96xf32>
    %cst_6 = arith.constant 0.00999999977 : f32
    %7 = vector.broadcast %cst_6 : f32 to vector<64x96xf32>
    %8 = arith.mulf %7, %6 : vector<64x96xf32>
    %9 = arith.maximumf %6, %8 : vector<64x96xf32>
    %c0_7 = arith.constant 0 : index
    %c0_8 = arith.constant 0 : index
    %c0_9 = arith.constant 0 : index
    %10 = vector.load %arg4[%c0_7, %c0_8, %c0_9] : memref<1x96x96xf32, #tpu.memory_space<vmem>>, vector<1x96x96xf32>
    %11 = vector.shape_cast %10 : vector<1x96x96xf32> to vector<96x96xf32>
    %cst_10 = arith.constant dense<0.000000e+00> : vector<64x96xf32>
    %12 = tpu.matmul %9, %11, %cst_10 {dimension_numbers = #tpu.dot_dimension_numbers<[1], [0], [0], [1], [0, 0, 1, 1], [], []>} : vector<64x96xf32>, vector<96x96xf32>, vector<64x96xf32> -> vector<64x96xf32>
    %c1 = arith.constant 1 : index
    %c0_11 = arith.constant 0 : index
    %13 = vector.load %arg5[%c1, %c0_11] : memref<2x96xf32, #tpu.memory_space<vmem>>, vector<1x96xf32>
    %14 = vector.broadcast %13 : vector<1x96xf32> to vector<64x96xf32>
    %15 = arith.addf %12, %14 : vector<64x96xf32>
    %cst_12 = arith.constant 0.00999999977 : f32
    %16 = vector.broadcast %cst_12 : f32 to vector<64x96xf32>
    %17 = arith.mulf %16, %15 : vector<64x96xf32>
    %18 = arith.maximumf %15, %17 : vector<64x96xf32>
    %c0_13 = arith.constant 0 : index
    %c0_14 = arith.constant 0 : index
    %19 = vector.load %arg2[%c0_13, %c0_14] : memref<64x96xf32, #tpu.memory_space<vmem>>, vector<64x96xf32>
    %20 = arith.mulf %18, %19 : vector<64x96xf32>
    %21 = vector.extract_strided_slice %20 {offsets = [0, 0], sizes = [64, 32], strides = [1, 1]} : vector<64x96xf32> to vector<64x32xf32>
    %22 = vector.extract_strided_slice %20 {offsets = [0, 32], sizes = [64, 32], strides = [1, 1]} : vector<64x96xf32> to vector<64x32xf32>
    %23 = arith.addf %21, %22 : vector<64x32xf32>
    %24 = vector.extract_strided_slice %20 {offsets = [0, 64], sizes = [64, 32], strides = [1, 1]} : vector<64x96xf32> to vector<64x32xf32>
    %25 = arith.addf %23, %24 : vector<64x32xf32>
    %26 = vector.shape_cast %25 : vector<64x32xf32> to vector<8x8x32xf32>
    %c0_15 = arith.constant 0 : index
    %c0_16 = arith.constant 0 : index
    %27 = vector.load %arg8[%c0_15, %c0_16] : memref<2x32xf32, #tpu.memory_space<vmem>>, vector<1x32xf32>
    %28 = vector.extract_strided_slice %0 {offsets = [0, 0, 0], sizes = [8, 8, 1], strides = [1, 1, 1]} : vector<8x8x3xf32> to vector<8x8x1xf32>
    %29 = vector.broadcast %28 : vector<8x8x1xf32> to vector<8x8x32xf32>
    %30 = arith.mulf %29, %26 : vector<8x8x32xf32>
    %cst_17 = arith.constant dense<0.000000e+00> : vector<8x32xf32>
    %31 = vector.multi_reduction <add>, %30, %cst_17 [1] : vector<8x8x32xf32> to vector<8x32xf32>
    %c0_18 = arith.constant 0 : index
    %c0_19 = arith.constant 0 : index
    %c0_20 = arith.constant 0 : index
    %32 = vector.load %arg6[%c0_18, %c0_19, %c0_20] : memref<3x32x32xf32, #tpu.memory_space<vmem>>, vector<1x32x32xf32>
    %33 = vector.shape_cast %32 : vector<1x32x32xf32> to vector<32x32xf32>
    %cst_21 = arith.constant dense<0.000000e+00> : vector<8x32xf32>
    %34 = tpu.matmul %31, %33, %cst_21 {dimension_numbers = #tpu.dot_dimension_numbers<[1], [0], [0], [1], [0, 0, 1, 1], [], []>} : vector<8x32xf32>, vector<32x32xf32>, vector<8x32xf32> -> vector<8x32xf32>
    %35 = vector.broadcast %27 : vector<1x32xf32> to vector<8x32xf32>
    %36 = arith.addf %35, %34 : vector<8x32xf32>
    %37 = vector.extract_strided_slice %0 {offsets = [0, 0, 1], sizes = [8, 8, 1], strides = [1, 1, 1]} : vector<8x8x3xf32> to vector<8x8x1xf32>
    %38 = vector.broadcast %37 : vector<8x8x1xf32> to vector<8x8x32xf32>
    %39 = arith.mulf %38, %26 : vector<8x8x32xf32>
    %cst_22 = arith.constant dense<0.000000e+00> : vector<8x32xf32>
    %40 = vector.multi_reduction <add>, %39, %cst_22 [1] : vector<8x8x32xf32> to vector<8x32xf32>
    %c1_23 = arith.constant 1 : index
    %c0_24 = arith.constant 0 : index
    %c0_25 = arith.constant 0 : index
    %41 = vector.load %arg6[%c1_23, %c0_24, %c0_25] : memref<3x32x32xf32, #tpu.memory_space<vmem>>, vector<1x32x32xf32>
    %42 = vector.shape_cast %41 : vector<1x32x32xf32> to vector<32x32xf32>
    %cst_26 = arith.constant dense<0.000000e+00> : vector<8x32xf32>
    %43 = tpu.matmul %40, %42, %cst_26 {dimension_numbers = #tpu.dot_dimension_numbers<[1], [0], [0], [1], [0, 0, 1, 1], [], []>} : vector<8x32xf32>, vector<32x32xf32>, vector<8x32xf32> -> vector<8x32xf32>
    %44 = arith.addf %36, %43 : vector<8x32xf32>
    %45 = vector.extract_strided_slice %0 {offsets = [0, 0, 2], sizes = [8, 8, 1], strides = [1, 1, 1]} : vector<8x8x3xf32> to vector<8x8x1xf32>
    %46 = vector.broadcast %45 : vector<8x8x1xf32> to vector<8x8x32xf32>
    %47 = arith.mulf %46, %26 : vector<8x8x32xf32>
    %cst_27 = arith.constant dense<0.000000e+00> : vector<8x32xf32>
    %48 = vector.multi_reduction <add>, %47, %cst_27 [1] : vector<8x8x32xf32> to vector<8x32xf32>
    %c2 = arith.constant 2 : index
    %c0_28 = arith.constant 0 : index
    %c0_29 = arith.constant 0 : index
    %49 = vector.load %arg6[%c2, %c0_28, %c0_29] : memref<3x32x32xf32, #tpu.memory_space<vmem>>, vector<1x32x32xf32>
    %50 = vector.shape_cast %49 : vector<1x32x32xf32> to vector<32x32xf32>
    %cst_30 = arith.constant dense<0.000000e+00> : vector<8x32xf32>
    %51 = tpu.matmul %48, %50, %cst_30 {dimension_numbers = #tpu.dot_dimension_numbers<[1], [0], [0], [1], [0, 0, 1, 1], [], []>} : vector<8x32xf32>, vector<32x32xf32>, vector<8x32xf32> -> vector<8x32xf32>
    %52 = arith.addf %44, %51 : vector<8x32xf32>
    %cst_31 = arith.constant 0.00999999977 : f32
    %53 = vector.broadcast %cst_31 : f32 to vector<8x32xf32>
    %54 = arith.mulf %53, %52 : vector<8x32xf32>
    %55 = arith.maximumf %52, %54 : vector<8x32xf32>
    %c0_32 = arith.constant 0 : index
    %c0_33 = arith.constant 0 : index
    %c0_34 = arith.constant 0 : index
    %56 = vector.load %arg7[%c0_32, %c0_33, %c0_34] : memref<1x32x32xf32, #tpu.memory_space<vmem>>, vector<1x32x32xf32>
    %57 = vector.shape_cast %56 : vector<1x32x32xf32> to vector<32x32xf32>
    %cst_35 = arith.constant dense<0.000000e+00> : vector<8x32xf32>
    %58 = tpu.matmul %55, %57, %cst_35 {dimension_numbers = #tpu.dot_dimension_numbers<[1], [0], [0], [1], [0, 0, 1, 1], [], []>} : vector<8x32xf32>, vector<32x32xf32>, vector<8x32xf32> -> vector<8x32xf32>
    %c1_36 = arith.constant 1 : index
    %c0_37 = arith.constant 0 : index
    %59 = vector.load %arg8[%c1_36, %c0_37] : memref<2x32xf32, #tpu.memory_space<vmem>>, vector<1x32xf32>
    %60 = vector.broadcast %59 : vector<1x32xf32> to vector<8x32xf32>
    %61 = arith.addf %58, %60 : vector<8x32xf32>
    %cst_38 = arith.constant 0.00999999977 : f32
    %62 = vector.broadcast %cst_38 : f32 to vector<8x32xf32>
    %63 = arith.mulf %62, %61 : vector<8x32xf32>
    %64 = arith.maximumf %61, %63 : vector<8x32xf32>
    %c0_39 = arith.constant 0 : index
    %c0_40 = arith.constant 0 : index
    %65 = vector.load %arg9[%c0_39, %c0_40] : memref<32x3xf32, #tpu.memory_space<vmem>>, vector<32x3xf32>
    %cst_41 = arith.constant dense<0.000000e+00> : vector<8x3xf32>
    %66 = tpu.matmul %64, %65, %cst_41 {dimension_numbers = #tpu.dot_dimension_numbers<[1], [0], [0], [1], [0, 0, 1, 1], [], []>} : vector<8x32xf32>, vector<32x3xf32>, vector<8x3xf32> -> vector<8x3xf32>
    %c0_42 = arith.constant 0 : index
    %c0_43 = arith.constant 0 : index
    %67 = vector.load %arg10[%c0_42, %c0_43] : memref<1x3xf32, #tpu.memory_space<vmem>>, vector<1x3xf32>
    %68 = vector.broadcast %67 : vector<1x3xf32> to vector<8x3xf32>
    %69 = arith.addf %66, %68 : vector<8x3xf32>
    %c0_44 = arith.constant 0 : index
    %c0_45 = arith.constant 0 : index
    %70 = vector.load %arg11[%c0_44, %c0_45] : memref<8x3xf32, #tpu.memory_space<vmem>>, vector<8x3xf32>
    tpu.vector_store %arg11[%c0_44, %c0_45], %69 {strides = array<i32>} : memref<8x3xf32, #tpu.memory_space<vmem>>, vector<8x3xf32>,
    return
  }
  func.func @transform_0(%arg0: i32) -> (i32, i32, i32) {
    %c0_i32 = arith.constant 0 : i32
    %c0_i32_0 = arith.constant 0 : i32
    %c0_i32_1 = arith.constant 0 : i32
    return %arg0, %c0_i32, %c0_i32_0 : i32, i32, i32
  }
  func.func @transform_1(%arg0: i32) -> (i32, i32) {
    %c0_i32 = arith.constant 0 : i32
    %c0_i32_0 = arith.constant 0 : i32
    %c0_i32_1 = arith.constant 0 : i32
    return %c0_i32, %c0_i32_0 : i32, i32
  }
  func.func @transform_2(%arg0: i32) -> (i32, i32) {
    %c0_i32 = arith.constant 0 : i32
    %c0_i32_0 = arith.constant 0 : i32
    %c0_i32_1 = arith.constant 0 : i32
    return %c0_i32, %c0_i32_0 : i32, i32
  }
  func.func @transform_3(%arg0: i32) -> (i32, i32, i32) {
    %c0_i32 = arith.constant 0 : i32
    %c0_i32_0 = arith.constant 0 : i32
    %c0_i32_1 = arith.constant 0 : i32
    %c0_i32_2 = arith.constant 0 : i32
    return %c0_i32, %c0_i32_0, %c0_i32_1 : i32, i32, i32
  }
  func.func @transform_4(%arg0: i32) -> (i32, i32) {
    %c0_i32 = arith.constant 0 : i32
    %c0_i32_0 = arith.constant 0 : i32
    %c0_i32_1 = arith.constant 0 : i32
    return %c0_i32, %c0_i32_0 : i32, i32
  }
  func.func @transform_5(%arg0: i32) -> (i32, i32, i32) {
    %c0_i32 = arith.constant 0 : i32
    %c0_i32_0 = arith.constant 0 : i32
    %c0_i32_1 = arith.constant 0 : i32
    %c0_i32_2 = arith.constant 0 : i32
    return %c0_i32, %c0_i32_0, %c0_i32_1 : i32, i32, i32
  }
  func.func @transform_6(%arg0: i32) -> (i32, i32, i32) {
    %c0_i32 = arith.constant 0 : i32
    %c0_i32_0 = arith.constant 0 : i32
    %c0_i32_1 = arith.constant 0 : i32
    %c0_i32_2 = arith.constant 0 : i32
    return %c0_i32, %c0_i32_0, %c0_i32_1 : i32, i32, i32
  }
  func.func @transform_7(%arg0: i32) -> (i32, i32) {
    %c0_i32 = arith.constant 0 : i32
    %c0_i32_0 = arith.constant 0 : i32
    %c0_i32_1 = arith.constant 0 : i32
    return %c0_i32, %c0_i32_0 : i32, i32
  }
  func.func @transform_8(%arg0: i32) -> (i32, i32) {
    %c0_i32 = arith.constant 0 : i32
    %c0_i32_0 = arith.constant 0 : i32
    %c0_i32_1 = arith.constant 0 : i32
    return %c0_i32, %c0_i32_0 : i32, i32
  }
  func.func @transform_9(%arg0: i32) -> (i32, i32) {
    %c0_i32 = arith.constant 0 : i32
    %c0_i32_0 = arith.constant 0 : i32
    %c0_i32_1 = arith.constant 0 : i32
    return %c0_i32, %c0_i32_0 : i32, i32
  }
  func.func @transform_10(%arg0: i32) -> (i32, i32) {
    %c0_i32 = arith.constant 0 : i32
    %c0_i32_0 = arith.constant 0 : i32
    return %arg0, %c0_i32 : i32, i32
  }
}

</mosaic_0001>

<llo_original>
// kernel: forward_batch.1
$region0: #{forward_batch.1}
  #allocation0 [shape = 'u32[]', space=smem, size = 0x4, offset = 0x4, fixed_abs, tag = 'smem constant byte address 0x4 - core index']
  #allocation1 [shape = 'u32[144,128]{1,0:T(1,128)}', space=vmem, size = 0x12000, scoped, tag = 'internal scratch']
  %s0 = inlined_call_operand.vmem [shape: f32[16,8,3], index: 0, kind: input, shape index: {}]
  %s1 = inlined_call_operand.vmem [shape: f32[64,96], index: 1, kind: input, shape index: {}]
  %s2 = inlined_call_operand.vmem [shape: f32[3,96], index: 2, kind: input, shape index: {}]
  %s3 = inlined_call_operand.hbm [shape: f32[1,96,96], index: 3, kind: input, shape index: {}]
  %s4 = inlined_call_operand.vmem [shape: f32[2,96], index: 4, kind: input, shape index: {}]
  %s5 = inlined_call_operand.vmem [shape: f32[3,32,32], index: 5, kind: input, shape index: {}]
  %s6 = inlined_call_operand.hbm [shape: f32[1,32,32], index: 6, kind: input, shape index: {}]
  %s7 = inlined_call_operand.vmem [shape: f32[2,32], index: 7, kind: input, shape index: {}]
  %s8 = inlined_call_operand.hbm [shape: f32[32,3], index: 8, kind: input, shape index: {}]
  %s9 = inlined_call_operand.vmem [shape: f32[1,3], index: 9, kind: input, shape index: {}]
  %s10 = inlined_call_operand.vmem [shape: f32[16,3], index: 10, kind: output, shape index: {}]
  %s11 = sld [smem:[#allocation0]]
  $region85: #{forward_batch.1} parent=0
    _
  %s13 = ssub.s32 1, %s11
  %s14 = scalar_select 0, %s13, %s11
  $region1: #{forward_batch.1} parent=0
    #allocation2 [shape = 'u8[49152]{0}', space=vmem, size = 0xc000, scoped, tag = 'input window, operand 3, single buffered']
    #allocation3 [shape = 's32[2]{0}', space=sflag, size = 0x8, scoped, tag = 'scoped memory for forward_batch.1']
    #allocation4 [shape = 'u8[16384]{0}', space=vmem, size = 0x4000, scoped, tag = 'input window, operand 6, single buffered']
    #allocation5 [shape = 's32[1]{0}', space=sflag, size = 0x4, scoped, tag = 'scoped memory for forward_batch.1']
    #allocation6 [shape = 'u8[16384]{0}', space=vmem, size = 0x4000, scoped, tag = 'input window, operand 8, single buffered']
    %15 = vsyncpa [#allocation3], 0
    %16 = vsyncpa [#allocation5], 0
    loop: start=0, step=1, limit=4
    $region2: #{forward_batch.1} parent=1 // loop_pre_header
      _
    $region3: #{forward_batch.1} parent=1 // loop_header
      %s18 = sphi 0, %s22
      %p19 = scmp.ge.s32.totalorder %s18, 4
      %s28 = sphi 0, %s30
      %s31 = sphi 0, %s28
      %s32 = sphi 0, %s31
      %s48 = sphi 0, %s32
      %s52 = sphi 0, %s52
      %s54 = sphi 0, %s52
      %s55 = sphi 0, %s54
      %s69 = sphi 0, %s55
      %s73 = sphi 0, %s73
      %s75 = sphi 0, %s73
      %s76 = sphi 0, %s75
      %s90 = sphi 0, %s76
      %s94 = sphi 0, %s94
      %s96 = sphi 0, %s94
      %s97 = sphi 0, %s96
      %s111 = sphi 0, %s97
      %s115 = sphi 0, %s115
      %s117 = sphi 0, %s115
      %s118 = sphi 0, %s117
      %s132 = sphi 0, %s118
      %s136 = sphi 0, %s136
      %s138 = sphi 0, %s136
      %s139 = sphi 0, %s138
      %s153 = sphi 0, %s139
      %s157 = sphi 0, %s157
      %s159 = sphi 0, %s157
      %s160 = sphi 0, %s159
      %s174 = sphi 0, %s160
      %s178 = sphi 0, %s178
      %s180 = sphi 0, %s178
      %s181 = sphi 0, %s180
      %s195 = sphi 0, %s181
      %s199 = sphi 0, %s199
      %s201 = sphi 0, %s199
      %s202 = sphi 0, %s201
      %s216 = sphi 0, %s202
      %s220 = sphi 0, %s220
      %s222 = sphi 0, %s220
      %s223 = sphi 0, %s222
      %s237 = sphi 0, %s223
      %s243 = sphi 0, %s245
      %s246 = sphi 0, %s243
      %s247 = sphi 0, %s246
      %s263 = sphi 0, %s247
    $region4: #{forward_batch.1} parent=1 // loop_header_branch
      %21 = sbr.rel (%p19) target = $region8
    $region5: #{forward_batch.1} parent=1 // loop_body
      %s23 = ssub.s32 %s18, 1
      %s24 = ssub.s32 %s18, 2
      %s25 = sadd.s32 %s18, 1
      %s26 = ssub.s32 %s18, %s25
      %p27 = scmp.eq.s32.totalorder %s26, 0
      %s29 = sadd.s32 %s28, 1
      %s30 = scalar_select %p27, %s28, %s29
      %p33 = pneg %p27
      %p34 = scmp.eq.s32.totalorder %s18, 1
      %p35 = por %p33, %p34
      %p36 = scmp.ne.s32.totalorder %s28, %s31
      %p37 = scmp.eq.s32.totalorder %s18, 0
      %p38 = por %p36, %p37
      %p39 = scmp.ne.s32.totalorder %s28, %s31
      %p40 = scmp.eq.s32.totalorder %s23, 1
      %p41 = por %p39, %p40
      %p42 = scmp.ne.s32.totalorder %s31, %s32
      %p43 = scmp.eq.s32.totalorder %s23, 0
      %p44 = por %p42, %p43
      %p45 = scmp.ne.s32.totalorder %s31, %s32
      %p46 = scmp.eq.s32.totalorder %s24, 1
      %p47 = por %p45, %p46
      %p49 = scmp.ne.s32.totalorder %s32, %s48
      %p50 = scmp.eq.s32.totalorder %s24, 0
      %p51 = por %p49, %p50
      %s53 = sadd.s32 %s52, 1
      %p56 = scmp.eq.s32.totalorder %s18, 1
      %p57 = scmp.ne.s32.totalorder %s52, %s54
      %p58 = scmp.eq.s32.totalorder %s18, 0
      %p59 = por %p57, %p58
      %p60 = scmp.ne.s32.totalorder %s52, %s54
      %p61 = scmp.eq.s32.totalorder %s23, 1
      %p62 = por %p60, %p61
      %p63 = scmp.ne.s32.totalorder %s54, %s55
      %p64 = scmp.eq.s32.totalorder %s23, 0
      %p65 = por %p63, %p64
      %p66 = scmp.ne.s32.totalorder %s54, %s55
      %p67 = scmp.eq.s32.totalorder %s24, 1
      %p68 = por %p66, %p67
      %p70 = scmp.ne.s32.totalorder %s55, %s69
      %p71 = scmp.eq.s32.totalorder %s24, 0
      %p72 = por %p70, %p71
      %s74 = sadd.s32 %s73, 1
      %p77 = scmp.eq.s32.totalorder %s18, 1
      %p78 = scmp.ne.s32.totalorder %s73, %s75
      %p79 = scmp.eq.s32.totalorder %s18, 0
      %p80 = por %p78, %p79
      %p81 = scmp.ne.s32.totalorder %s73, %s75
      %p82 = scmp.eq.s32.totalorder %s23, 1
      %p83 = por %p81, %p82
      %p84 = scmp.ne.s32.totalorder %s75, %s76
      %p85 = scmp.eq.s32.totalorder %s23, 0
      %p86 = por %p84, %p85
      %p87 = scmp.ne.s32.totalorder %s75, %s76
      %p88 = scmp.eq.s32.totalorder %s24, 1
      %p89 = por %p87, %p88
      %p91 = scmp.ne.s32.totalorder %s76, %s90
      %p92 = scmp.eq.s32.totalorder %s24, 0
      %p93 = por %p91, %p92
      %s95 = sadd.s32 %s94, 1
      %p98 = scmp.eq.s32.totalorder %s18, 1
      %p99 = scmp.ne.s32.totalorder %s94, %s96
      %p100 = scmp.eq.s32.totalorder %s18, 0
      %p101 = por %p99, %p100
      %p102 = scmp.ne.s32.totalorder %s94, %s96
      %p103 = scmp.eq.s32.totalorder %s23, 1
      %p104 = por %p102, %p103
      %p105 = scmp.ne.s32.totalorder %s96, %s97
      %p106 = scmp.eq.s32.totalorder %s23, 0
      %p107 = por %p105, %p106
      %p108 = scmp.ne.s32.totalorder %s96, %s97
      %p109 = scmp.eq.s32.totalorder %s24, 1
      %p110 = por %p108, %p109
      %p112 = scmp.ne.s32.totalorder %s97, %s111
      %p113 = scmp.eq.s32.totalorder %s24, 0
      %p114 = por %p112, %p113
      %s116 = sadd.s32 %s115, 1
      %p119 = scmp.eq.s32.totalorder %s18, 1
      %p120 = scmp.ne.s32.totalorder %s115, %s117
      %p121 = scmp.eq.s32.totalorder %s18, 0
      %p122 = por %p120, %p121
      %p123 = scmp.ne.s32.totalorder %s115, %s117
      %p124 = scmp.eq.s32.totalorder %s23, 1
      %p125 = por %p123, %p124
      %p126 = scmp.ne.s32.totalorder %s117, %s118
      %p127 = scmp.eq.s32.totalorder %s23, 0
      %p128 = por %p126, %p127
      %p129 = scmp.ne.s32.totalorder %s117, %s118
      %p130 = scmp.eq.s32.totalorder %s24, 1
      %p131 = por %p129, %p130
      %p133 = scmp.ne.s32.totalorder %s118, %s132
      %p134 = scmp.eq.s32.totalorder %s24, 0
      %p135 = por %p133, %p134
      %s137 = sadd.s32 %s136, 1
      %p140 = scmp.eq.s32.totalorder %s18, 1
      %p141 = scmp.ne.s32.totalorder %s136, %s138
      %p142 = scmp.eq.s32.totalorder %s18, 0
      %p143 = por %p141, %p142
      %p144 = scmp.ne.s32.totalorder %s136, %s138
      %p145 = scmp.eq.s32.totalorder %s23, 1
      %p146 = por %p144, %p145
      %p147 = scmp.ne.s32.totalorder %s138, %s139
      %p148 = scmp.eq.s32.totalorder %s23, 0
      %p149 = por %p147, %p148
      %p150 = scmp.ne.s32.totalorder %s138, %s139
      %p151 = scmp.eq.s32.totalorder %s24, 1
      %p152 = por %p150, %p151
      %p154 = scmp.ne.s32.totalorder %s139, %s153
      %p155 = scmp.eq.s32.totalorder %s24, 0
      %p156 = por %p154, %p155
      %s158 = sadd.s32 %s157, 1
      %p161 = scmp.eq.s32.totalorder %s18, 1
      %p162 = scmp.ne.s32.totalorder %s157, %s159
      %p163 = scmp.eq.s32.totalorder %s18, 0
      %p164 = por %p162, %p163
      %p165 = scmp.ne.s32.totalorder %s157, %s159
      %p166 = scmp.eq.s32.totalorder %s23, 1
      %p167 = por %p165, %p166
      %p168 = scmp.ne.s32.totalorder %s159, %s160
      %p169 = scmp.eq.s32.totalorder %s23, 0
      %p170 = por %p168, %p169
      %p171 = scmp.ne.s32.totalorder %s159, %s160
      %p172 = scmp.eq.s32.totalorder %s24, 1
      %p173 = por %p171, %p172
      %p175 = scmp.ne.s32.totalorder %s160, %s174
      %p176 = scmp.eq.s32.totalorder %s24, 0
      %p177 = por %p175, %p176
      %s179 = sadd.s32 %s178, 1
      %p182 = scmp.eq.s32.totalorder %s18, 1
      %p183 = scmp.ne.s32.totalorder %s178, %s180
      %p184 = scmp.eq.s32.totalorder %s18, 0
      %p185 = por %p183, %p184
      %p186 = scmp.ne.s32.totalorder %s178, %s180
      %p187 = scmp.eq.s32.totalorder %s23, 1
      %p188 = por %p186, %p187
      %p189 = scmp.ne.s32.totalorder %s180, %s181
      %p190 = scmp.eq.s32.totalorder %s23, 0
      %p191 = por %p189, %p190
      %p192 = scmp.ne.s32.totalorder %s180, %s181
      %p193 = scmp.eq.s32.totalorder %s24, 1
      %p194 = por %p192, %p193
      %p196 = scmp.ne.s32.totalorder %s181, %s195
      %p197 = scmp.eq.s32.totalorder %s24, 0
      %p198 = por %p196, %p197
      %s200 = sadd.s32 %s199, 1
      %p203 = scmp.eq.s32.totalorder %s18, 1
      %p204 = scmp.ne.s32.totalorder %s199, %s201
      %p205 = scmp.eq.s32.totalorder %s18, 0
      %p206 = por %p204, %p205
      %p207 = scmp.ne.s32.totalorder %s199, %s201
      %p208 = scmp.eq.s32.totalorder %s23, 1
      %p209 = por %p207, %p208
      %p210 = scmp.ne.s32.totalorder %s201, %s202
      %p211 = scmp.eq.s32.totalorder %s23, 0
      %p212 = por %p210, %p211
      %p213 = scmp.ne.s32.totalorder %s201, %s202
      %p214 = scmp.eq.s32.totalorder %s24, 1
      %p215 = por %p213, %p214
      %p217 = scmp.ne.s32.totalorder %s202, %s216
      %p218 = scmp.eq.s32.totalorder %s24, 0
      %p219 = por %p217, %p218
      %s221 = sadd.s32 %s220, 1
      %p224 = scmp.eq.s32.totalorder %s18, 1
      %p225 = scmp.ne.s32.totalorder %s220, %s222
      %p226 = scmp.eq.s32.totalorder %s18, 0
      %p227 = por %p225, %p226
      %p228 = scmp.ne.s32.totalorder %s220, %s222
      %p229 = scmp.eq.s32.totalorder %s23, 1
      %p230 = por %p228, %p229
      %p231 = scmp.ne.s32.totalorder %s222, %s223
      %p232 = scmp.eq.s32.totalorder %s23, 0
      %p233 = por %p231, %p232
      %p234 = scmp.ne.s32.totalorder %s222, %s223
      %p235 = scmp.eq.s32.totalorder %s24, 1
      %p236 = por %p234, %p235
      %p238 = scmp.ne.s32.totalorder %s223, %s237
      %p239 = scmp.eq.s32.totalorder %s24, 0
      %p240 = por %p238, %p239
      %s241 = ssub.s32 %s18, %s25
      %p242 = scmp.eq.s32.totalorder %s241, 0
      %s244 = sadd.s32 %s243, 1
      %s245 = scalar_select %p242, %s243, %s244
      %p248 = pneg %p242
      %p249 = scmp.eq.s32.totalorder %s18, 1
      %p250 = por %p248, %p249
      %p251 = scmp.ne.s32.totalorder %s243, %s246
      %p252 = scmp.eq.s32.totalorder %s18, 0
      %p253 = por %p251, %p252
      %p254 = scmp.ne.s32.totalorder %s243, %s246
      %p255 = scmp.eq.s32.totalorder %s23, 1
      %p256 = por %p254, %p255
      %p257 = scmp.ne.s32.totalorder %s246, %s247
      %p258 = scmp.eq.s32.totalorder %s23, 0
      %p259 = por %p257, %p258
      %p260 = scmp.ne.s32.totalorder %s246, %s247
      %p261 = scmp.eq.s32.totalorder %s24, 1
      %p262 = por %p260, %p261
      %p264 = scmp.ne.s32.totalorder %s247, %s263
      %p265 = scmp.eq.s32.totalorder %s24, 0
      %p266 = por %p264, %p265
      %p267 = scmp.le.s32.totalorder 1, %s18
      %p268 = scmp.lt.s32.totalorder %s18, 3
      %p269 = pnand %p267, %p268
      %p270 = pneg %p269
      // Predicated region
      $region9: #{forward_batch.1} parent=5 // pred_check
        _
      $region10: #{forward_batch.1} parent=5 // pred_check_branch
        %272 = sbr.rel (%p269) target = $region12
      $region11: #{forward_batch.1} parent=5 // pred_region
        %s273 = ssub.s32 %s18, 1
        // Predicated region
        $region13: #{forward_batch.1} parent=11 // pred_check
          %p274 = pneg %p65
        $region14: #{forward_batch.1} parent=11 // pred_check_branch
          %276 = sbr.rel (%p274) target = $region16
        $region15: #{forward_batch.1} parent=11 // pred_region
          _
        $region16: #{forward_batch.1} parent=11 // pred_fallthru
          _
        // Predicated region
        $region17: #{forward_batch.1} parent=11 // pred_check
          %p277 = pneg %p86
        $region18: #{forward_batch.1} parent=11 // pred_check_branch
          %279 = sbr.rel (%p277) target = $region20
        $region19: #{forward_batch.1} parent=11 // pred_region
          _
        $region20: #{forward_batch.1} parent=11 // pred_fallthru
          _
        // Predicated region
        $region21: #{forward_batch.1} parent=11 // pred_check
          %p280 = pneg %p107
        $region22: #{forward_batch.1} parent=11 // pred_check_branch
          %282 = sbr.rel (%p280) target = $region24
        $region23: #{forward_batch.1} parent=11 // pred_region
          %s284 = ssub.s32 1536, 1536
          %285 = vsyncadd [#allocation3], %s284
          %s286 = sshll.u32 [#allocation2], 4
          %s287 = int_to_ptr.vmem [resolvable:$true] %s286
          %292 = dma.hbm_to_vmem [thread:$0]  %s3, 1536, %s287, [#allocation3], 128, 128, 8
        $region24: #{forward_batch.1} parent=11 // pred_fallthru
          _
        // Predicated region
        $region25: #{forward_batch.1} parent=11 // pred_check
          %p293 = pneg %p128
        $region26: #{forward_batch.1} parent=11 // pred_check_branch
          %295 = sbr.rel (%p293) target = $region28
        $region27: #{forward_batch.1} parent=11 // pred_region
          _
        $region28: #{forward_batch.1} parent=11 // pred_fallthru
          _
        // Predicated region
        $region29: #{forward_batch.1} parent=11 // pred_check
          %p296 = pneg %p149
        $region30: #{forward_batch.1} parent=11 // pred_check_branch
          %298 = sbr.rel (%p296) target = $region32
        $region31: #{forward_batch.1} parent=11 // pred_region
          _
        $region32: #{forward_batch.1} parent=11 // pred_fallthru
          _
        // Predicated region
        $region33: #{forward_batch.1} parent=11 // pred_check
          %p299 = pneg %p170
        $region34: #{forward_batch.1} parent=11 // pred_check_branch
          %301 = sbr.rel (%p299) target = $region36
        $region35: #{forward_batch.1} parent=11 // pred_region
          %s303 = ssub.s32 512, 512
          %304 = vsyncadd [#allocation5], %s303
          %s305 = sshll.u32 [#allocation4], 4
          %s306 = int_to_ptr.vmem [resolvable:$true] %s305
          %311 = dma.hbm_to_vmem [thread:$0]  %s6, 512, %s306, [#allocation5], 128, 128, 8
        $region36: #{forward_batch.1} parent=11 // pred_fallthru
          _
        // Predicated region
        $region37: #{forward_batch.1} parent=11 // pred_check
          %p312 = pneg %p191
        $region38: #{forward_batch.1} parent=11 // pred_check_branch
          %314 = sbr.rel (%p312) target = $region40
        $region39: #{forward_batch.1} parent=11 // pred_region
          _
        $region40: #{forward_batch.1} parent=11 // pred_fallthru
          _
        // Predicated region
        $region41: #{forward_batch.1} parent=11 // pred_check
          %p315 = pneg %p212
        $region42: #{forward_batch.1} parent=11 // pred_check_branch
          %317 = sbr.rel (%p315) target = $region44
        $region43: #{forward_batch.1} parent=11 // pred_region
          %s319 = ssub.s32 512, 512
          %320 = vsyncadd [#allocation5], %s319
          %s321 = sshll.u32 [#allocation6], 4
          %s322 = int_to_ptr.vmem [resolvable:$true] %s321
          %327 = dma.hbm_to_vmem [thread:$0]  %s8, 512, %s322, [#allocation5], 128, 128, 8
        $region44: #{forward_batch.1} parent=11 // pred_fallthru
          _
        // Predicated region
        $region45: #{forward_batch.1} parent=11 // pred_check
          %p328 = pneg %p233
        $region46: #{forward_batch.1} parent=11 // pred_check_branch
          %330 = sbr.rel (%p328) target = $region48
        $region47: #{forward_batch.1} parent=11 // pred_region
          _
        $region48: #{forward_batch.1} parent=11 // pred_fallthru
          _
      $region12: #{forward_batch.1} parent=5 // pred_fallthru
        _
      %p331 = scmp.lt.s32.totalorder %s18, 2
      // Predicated region
      $region49: #{forward_batch.1} parent=5 // pred_check
        %p332 = pneg %p331
      $region50: #{forward_batch.1} parent=5 // pred_check_branch
        %334 = sbr.rel (%p332) target = $region52
      $region51: #{forward_batch.1} parent=5 // pred_region
        // Predicated region
        $region53: #{forward_batch.1} parent=51 // pred_check
          %p335 = pneg %p38
        $region54: #{forward_batch.1} parent=51 // pred_check_branch
          %337 = sbr.rel (%p335) target = $region56
        $region55: #{forward_batch.1} parent=51 // pred_region
          %s338 = smul.u32 8, %s18
          %p339 = scmp.lt.s32.totalorder %s338, 15
          %s340 = scalar_select %p339, %s338, 15
          %s341 = smul.addr %s340, 8
          %s342 = scalar_lea.vmem %s0, %s341
          %s343 = smul.u32 8, %s18
        $region56: #{forward_batch.1} parent=51 // pred_fallthru
          _
      $region52: #{forward_batch.1} parent=5 // pred_fallthru
        _
      %p344 = scmp.le.s32.totalorder 1, %s18
      %p345 = scmp.lt.s32.totalorder %s18, 3
      %p346 = pnand %p344, %p345
      %p347 = pneg %p346
      // Predicated region
      $region57: #{forward_batch.1} parent=5 // pred_check
        _
      $region58: #{forward_batch.1} parent=5 // pred_check_branch
        %349 = sbr.rel (%p346) target = $region60
      $region59: #{forward_batch.1} parent=5 // pred_region
        %s350 = ssub.s32 %s18, 1
        // Predicated region
        $region61: #{forward_batch.1} parent=59 // pred_check
          %p351 = pneg %p107
        $region62: #{forward_batch.1} parent=59 // pred_check_branch
          %353 = sbr.rel (%p351) target = $region64
        $region63: #{forward_batch.1} parent=59 // pred_region
          %354 = dma.done [#allocation3], 1536
        $region64: #{forward_batch.1} parent=59 // pred_fallthru
          _
        // Predicated region
        $region65: #{forward_batch.1} parent=59 // pred_check
          %p355 = pneg %p170
        $region66: #{forward_batch.1} parent=59 // pred_check_branch
          %357 = sbr.rel (%p355) target = $region68
        $region67: #{forward_batch.1} parent=59 // pred_region
          %358 = dma.done [#allocation5], 512
        $region68: #{forward_batch.1} parent=59 // pred_fallthru
          _
        // Predicated region
        $region69: #{forward_batch.1} parent=59 // pred_check
          %p359 = pneg %p212
        $region70: #{forward_batch.1} parent=59 // pred_check_branch
          %361 = sbr.rel (%p359) target = $region72
        $region71: #{forward_batch.1} parent=59 // pred_region
          %362 = dma.done [#allocation5], 512
        $region72: #{forward_batch.1} parent=59 // pred_fallthru
          _
        %s363 = smul.u32 8, %s23
        %p364 = scmp.lt.s32.totalorder %s363, 15
        %s365 = scalar_select %p364, %s363, 15
        %s366 = smul.addr %s365, 8
        %s367 = scalar_lea.vmem %s0, %s366
        %p368 = pneg %p44
        %p369 = pneg %p41
        %p370 = pneg %p65
        %p371 = pneg %p62
        %p372 = pneg %p86
        %p373 = pneg %p83
        %p374 = pneg %p107
        %p375 = pneg %p104
        %p376 = pneg %p128
        %p377 = pneg %p125
        %p378 = pneg %p149
        %p379 = pneg %p146
        %p380 = pneg %p170
        %p381 = pneg %p167
        %p382 = pneg %p191
        %p383 = pneg %p188
        %p384 = pneg %p212
        %p385 = pneg %p209
        %p386 = pneg %p233
        %p387 = pneg %p230
        %p388 = pneg %p259
        %p389 = pneg %p256
        %p390 = scmp.lt.s32.totalorder %s23, 1
        %s391 = scalar_select %p390, %s23, 1
        %s392 = smul.addr %s391, 8
        %s393 = scalar_lea.vmem %s10, %s392
        %s394 = smul.u32 8, %s23
        %p395 = scmp.lt.s32.totalorder %s394, 15
        %s396 = scalar_select %p395, %s394, 15
        %s397 = smul.addr %s396, 8
        %s398 = scalar_lea.vmem %s0, %s397
        %s399 = smul.u32 8, %s23
        %p400 = scmp.lt.s32.totalorder %s23, 1
        %s401 = scalar_select %p400, %s23, 1
        %s402 = smul.addr %s401, 8
        %s403 = scalar_lea.vmem %s10, %s402
        %v404 = vld [vmem:[%s398] sm:$0xff]
        %v405 = vld [vmem:[%s398 + $0x8] sm:$0xff]
        %v406 = vld [vmem:[%s398 + $0x10] sm:$0xff]
        %v407 = vld [vmem:[%s398 + $0x18] sm:$0xff]
        %v408 = vld [vmem:[%s398 + $0x20] sm:$0xff]
        %v409 = vld [vmem:[%s398 + $0x28] sm:$0xff]
        %v410 = vld [vmem:[%s398 + $0x30] sm:$0xff]
        %v411 = vld [vmem:[%s398 + $0x38] sm:$0xff]
        %v412 = vld [vmem:[%s2] sm:$0x7]
        %v413 = vld [vmem:[%s4] sm:$0x1]
        %v414 = vlaneseq
        %v415 = vshrl.u32 %v414, 7
        %v416 = vsub.s32 0, %v415
        %v417 = vrot.slane %v413, %v416
        %vm418 = vcmask 23552
        %v420 = vsel %vm418, %v404, 0
        %v423 = vsel %vm418, %v405, 0
        %v426 = vsel %vm418, %v406, 0
        %v429 = vsel %vm418, %v407, 0
        %v432 = vsel %vm418, %v408, 0
        %v435 = vsel %vm418, %v409, 0
        %v438 = vsel %vm418, %v410, 0
        %v441 = vsel %vm418, %v411, 0
        %vm443 = vcmask 1042432
        %v445 = vsel %vm443, %v412, 0
        %447 = vmatprep.subr.mxu0 0.0
        %448 = vmatpush1.msra.mxu0 %v445
        %449 = vmatprep.subr.mxu0 0.0
        %450 = vmatpush1.msra.mxu0 0.0
        %451 = vmatprep.subr.mxu0 0.0
        %452 = vmatpush1.msra.mxu0 0.0
        %453 = vmatprep.subr.mxu0 0.0
        %454 = vmatpush1.msra.mxu0 0.0
        %455 = vmatprep.subr.mxu0 0.0
        %456 = vmatpush1.msra.mxu0 0.0
        %457 = vmatprep.subr.mxu0 0.0
        %458 = vmatpush1.msra.mxu0 0.0
        %459 = vmatprep.subr.mxu0 0.0
        %460 = vmatpush1.msra.mxu0 0.0
        %461 = vmatprep.subr.mxu0 0.0
        %462 = vmatpush1.msra.mxu0 0.0
        %463 = vmatprep.subr.mxu0 0.0
        %464 = vmatpush1.msra.mxu0 0.0
        %465 = vmatprep.subr.mxu0 0.0
        %466 = vmatpush1.msra.mxu0 0.0
        %467 = vmatprep.subr.mxu0 0.0
        %468 = vmatpush1.msra.mxu0 0.0
        %469 = vmatprep.subr.mxu0 0.0
        %470 = vmatpush1.msra.mxu0 0.0
        %471 = vmatprep.subr.mxu0 0.0
        %472 = vmatpush1.msra.mxu0 0.0
        %473 = vmatprep.subr.mxu0 0.0
        %474 = vmatpush1.msra.mxu0 0.0
        %475 = vmatprep.subr.mxu0 0.0
        %476 = vmatpush1.msra.mxu0 0.0
        %477 = vmatprep.subr.mxu0 0.0
        %478 = vmatpush1.msra.mxu0 0.0
        %479 = vmatprep.subr.mxu0 0.0
        %480 = vmatpush1.msra.mxu0 0.0
        %481 = vmatprep.subr.mxu0 0.0
        %482 = vmatpush1.msra.mxu0 0.0
        %483 = vmatprep.subr.mxu0 0.0
        %484 = vmatpush1.msra.mxu0 0.0
        %485 = vmatprep.subr.mxu0 0.0
        %486 = vmatpush1.msra.mxu0 0.0
        %487 = vmatprep.subr.mxu0 0.0
        %488 = vmatpush1.msra.mxu0 0.0
        %489 = vmatprep.subr.mxu0 0.0
        %490 = vmatpush1.msra.mxu0 0.0
        %491 = vmatprep.subr.mxu0 0.0
        %492 = vmatpush1.msra.mxu0 0.0
        %493 = vmatprep.subr.mxu0 0.0
        %494 = vmatpush1.msra.mxu0 0.0
        %495 = vmatprep.subr.mxu0 0.0
        %496 = vmatpush1.msra.mxu0 0.0
        %497 = vmatprep.subr.mxu0 0.0
        %498 = vmatpush1.msra.mxu0 0.0
        %499 = vmatprep.subr.mxu0 0.0
        %500 = vmatpush1.msra.mxu0 0.0
        %501 = vmatprep.subr.mxu0 0.0
        %502 = vmatpush1.msra.mxu0 0.0
        %503 = vmatprep.subr.mxu0 0.0
        %504 = vmatpush1.msra.mxu0 0.0
        %505 = vmatprep.subr.mxu0 0.0
        %506 = vmatpush1.msra.mxu0 0.0
        %507 = vmatprep.subr.mxu0 0.0
        %508 = vmatpush1.msra.mxu0 0.0
        %509 = vmatprep.subr.mxu0 0.0
        %510 = vmatpush1.msra.mxu0 0.0
        %511 = vmatprep.mubr.f32.mxu0 0.0
        %512 = vmatmul.mubr.f32.gmra.mrb[0].mxu0 %v420
        %v513 = vpop.f32.mrb[0].mxu0
        %v514 = vadd.f32 %v417, %v513
        %v515 = vpop.f32.mrb[0].mxu0
        %516 = vmatprep.mubr.f32.mxu0 0.0
        %517 = vmatmul.mubr.f32.gmra.mrb[0].mxu0 %v423
        %v518 = vpop.f32.mrb[0].mxu0
        %v519 = vadd.f32 %v417, %v518
        %v520 = vpop.f32.mrb[0].mxu0
        %521 = vmatprep.mubr.f32.mxu0 0.0
        %522 = vmatmul.mubr.f32.gmra.mrb[0].mxu0 %v426
        %v523 = vpop.f32.mrb[0].mxu0
        %v524 = vadd.f32 %v417, %v523
        %v525 = vpop.f32.mrb[0].mxu0
        %526 = vmatprep.mubr.f32.mxu0 0.0
        %527 = vmatmul.mubr.f32.gmra.mrb[0].mxu0 %v429
        %v528 = vpop.f32.mrb[0].mxu0
        %v529 = vadd.f32 %v417, %v528
        %v530 = vpop.f32.mrb[0].mxu0
        %531 = vmatprep.mubr.f32.mxu0 0.0
        %532 = vmatmul.mubr.f32.gmra.mrb[0].mxu0 %v432
        %v533 = vpop.f32.mrb[0].mxu0
        %v534 = vadd.f32 %v417, %v533
        %v535 = vpop.f32.mrb[0].mxu0
        %536 = vmatprep.mubr.f32.mxu0 0.0
        %537 = vmatmul.mubr.f32.gmra.mrb[0].mxu0 %v435
        %v538 = vpop.f32.mrb[0].mxu0
        %v539 = vadd.f32 %v417, %v538
        %v540 = vpop.f32.mrb[0].mxu0
        %541 = vmatprep.mubr.f32.mxu0 0.0
        %542 = vmatmul.mubr.f32.gmra.mrb[0].mxu0 %v438
        %v543 = vpop.f32.mrb[0].mxu0
        %v544 = vadd.f32 %v417, %v543
        %v545 = vpop.f32.mrb[0].mxu0
        %546 = vmatprep.mubr.f32.mxu0 0.0
        %547 = vmatmul.mubr.f32.gmra.mrb[0].mxu0 %v441
        %v548 = vpop.f32.mrb[0].mxu0
        %v549 = vadd.f32 %v417, %v548
        %v550 = vpop.f32.mrb[0].mxu0
        %551 = vdwg.mxu0
        %v552 = vmul.f32 %v514, 0.01
        %v553 = vmul.f32 %v519, 0.01
        %v554 = vmul.f32 %v524, 0.01
        %v555 = vmul.f32 %v529, 0.01
        %v556 = vmul.f32 %v534, 0.01
        %v557 = vmul.f32 %v539, 0.01
        %v558 = vmul.f32 %v544, 0.01
        %v559 = vmul.f32 %v549, 0.01
        %v560 = vmax.f32 %v514, %v552
        %v561 = vmax.f32 %v519, %v553
        %v562 = vmax.f32 %v524, %v554
        %v563 = vmax.f32 %v529, %v555
        %v564 = vmax.f32 %v534, %v556
        %v565 = vmax.f32 %v539, %v557
        %v566 = vmax.f32 %v544, %v558
        %v567 = vmax.f32 %v549, %v559
        %v568 = vld [vmem:[#allocation2] sm:$0xff]
        %v569 = vld [vmem:[#allocation2 + $0x8] sm:$0xff]
        %v570 = vld [vmem:[#allocation2 + $0x10] sm:$0xff]
        %v571 = vld [vmem:[#allocation2 + $0x18] sm:$0xff]
        %v572 = vld [vmem:[#allocation2 + $0x20] sm:$0xff]
        %v573 = vld [vmem:[#allocation2 + $0x28] sm:$0xff]
        %v574 = vld [vmem:[#allocation2 + $0x30] sm:$0xff]
        %v575 = vld [vmem:[#allocation2 + $0x38] sm:$0xff]
        %v576 = vld [vmem:[#allocation2 + $0x40] sm:$0xff]
        %v577 = vld [vmem:[#allocation2 + $0x48] sm:$0xff]
        %v578 = vld [vmem:[#allocation2 + $0x50] sm:$0xff]
        %v579 = vld [vmem:[#allocation2 + $0x58] sm:$0xff]
        %v580 = vld [vmem:[%s4 + $0x1] sm:$0x1]
        %v581 = vlaneseq
        %v582 = vshrl.u32 %v581, 7
        %v583 = vsub.s32 0, %v582
        %v584 = vrot.slane %v580, %v583
        %vm585 = vcmask 785408
        %v587 = vsel %vm585, %v560, 0
        %v590 = vsel %vm585, %v561, 0
        %v593 = vsel %vm585, %v562, 0
        %v596 = vsel %vm585, %v563, 0
        %v599 = vsel %vm585, %v564, 0
        %v602 = vsel %vm585, %v565, 0
        %v605 = vsel %vm585, %v566, 0
        %v608 = vsel %vm585, %v567, 0
        %610 = vmatprep.subr.mxu0 0.0
        %611 = vmatpush1.msra.mxu0 %v568
        %612 = vmatprep.subr.mxu0 0.0
        %613 = vmatpush1.msra.mxu0 %v569
        %614 = vmatprep.subr.mxu0 0.0
        %615 = vmatpush1.msra.mxu0 %v570
        %616 = vmatprep.subr.mxu0 0.0
        %617 = vmatpush1.msra.mxu0 %v571
        %618 = vmatprep.subr.mxu0 0.0
        %619 = vmatpush1.msra.mxu0 %v572
        %620 = vmatprep.subr.mxu0 0.0
        %621 = vmatpush1.msra.mxu0 %v573
        %622 = vmatprep.subr.mxu0 0.0
        %623 = vmatpush1.msra.mxu0 %v574
        %624 = vmatprep.subr.mxu0 0.0
        %625 = vmatpush1.msra.mxu0 %v575
        %626 = vmatprep.subr.mxu0 0.0
        %627 = vmatpush1.msra.mxu0 %v576
        %628 = vmatprep.subr.mxu0 0.0
        %629 = vmatpush1.msra.mxu0 %v577
        %630 = vmatprep.subr.mxu0 0.0
        %631 = vmatpush1.msra.mxu0 %v578
        %632 = vmatprep.subr.mxu0 0.0
        %633 = vmatpush1.msra.mxu0 %v579
        %634 = vmatprep.subr.mxu0 0.0
        %635 = vmatpush1.msra.mxu0 0.0
        %636 = vmatprep.subr.mxu0 0.0
        %637 = vmatpush1.msra.mxu0 0.0
        %638 = vmatprep.subr.mxu0 0.0
        %639 = vmatpush1.msra.mxu0 0.0
        %640 = vmatprep.subr.mxu0 0.0
        %641 = vmatpush1.msra.mxu0 0.0
        %642 = vmatprep.subr.mxu0 0.0
        %643 = vmatpush1.msra.mxu0 0.0
        %644 = vmatprep.subr.mxu0 0.0
        %645 = vmatpush1.msra.mxu0 0.0
        %646 = vmatprep.subr.mxu0 0.0
        %647 = vmatpush1.msra.mxu0 0.0
        %648 = vmatprep.subr.mxu0 0.0
        %649 = vmatpush1.msra.mxu0 0.0
        %650 = vmatprep.subr.mxu0 0.0
        %651 = vmatpush1.msra.mxu0 0.0
        %652 = vmatprep.subr.mxu0 0.0
        %653 = vmatpush1.msra.mxu0 0.0
        %654 = vmatprep.subr.mxu0 0.0
        %655 = vmatpush1.msra.mxu0 0.0
        %656 = vmatprep.subr.mxu0 0.0
        %657 = vmatpush1.msra.mxu0 0.0
        %658 = vmatprep.subr.mxu0 0.0
        %659 = vmatpush1.msra.mxu0 0.0
        %660 = vmatprep.subr.mxu0 0.0
        %661 = vmatpush1.msra.mxu0 0.0
        %662 = vmatprep.subr.mxu0 0.0
        %663 = vmatpush1.msra.mxu0 0.0
        %664 = vmatprep.subr.mxu0 0.0
        %665 = vmatpush1.msra.mxu0 0.0
        %666 = vmatprep.subr.mxu0 0.0
        %667 = vmatpush1.msra.mxu0 0.0
        %668 = vmatprep.subr.mxu0 0.0
        %669 = vmatpush1.msra.mxu0 0.0
        %670 = vmatprep.subr.mxu0 0.0
        %671 = vmatpush1.msra.mxu0 0.0
        %672 = vmatprep.subr.mxu0 0.0
        %673 = vmatpush1.msra.mxu0 0.0
        %674 = vmatprep.mubr.f32.mxu0 0.0
        %675 = vmatmul.mubr.f32.gmra.mrb[0].mxu0 %v587
        %v676 = vpop.f32.mrb[0].mxu0
        %v677 = vadd.f32 %v584, %v676
        %v678 = vpop.f32.mrb[0].mxu0
        %679 = vmatprep.mubr.f32.mxu0 0.0
        %680 = vmatmul.mubr.f32.gmra.mrb[0].mxu0 %v590
        %v681 = vpop.f32.mrb[0].mxu0
        %v682 = vadd.f32 %v584, %v681
        %v683 = vpop.f32.mrb[0].mxu0
        %684 = vmatprep.mubr.f32.mxu0 0.0
        %685 = vmatmul.mubr.f32.gmra.mrb[0].mxu0 %v593
        %v686 = vpop.f32.mrb[0].mxu0
        %v687 = vadd.f32 %v584, %v686
        %v688 = vpop.f32.mrb[0].mxu0
        %689 = vmatprep.mubr.f32.mxu0 0.0
        %690 = vmatmul.mubr.f32.gmra.mrb[0].mxu0 %v596
        %v691 = vpop.f32.mrb[0].mxu0
        %v692 = vadd.f32 %v584, %v691
        %v693 = vpop.f32.mrb[0].mxu0
        %694 = vmatprep.mubr.f32.mxu0 0.0
        %695 = vmatmul.mubr.f32.gmra.mrb[0].mxu0 %v599
        %v696 = vpop.f32.mrb[0].mxu0
        %v697 = vadd.f32 %v584, %v696
        %v698 = vpop.f32.mrb[0].mxu0
        %699 = vmatprep.mubr.f32.mxu0 0.0
        %700 = vmatmul.mubr.f32.gmra.mrb[0].mxu0 %v602
        %v701 = vpop.f32.mrb[0].mxu0
        %v702 = vadd.f32 %v584, %v701
        %v703 = vpop.f32.mrb[0].mxu0
        %704 = vmatprep.mubr.f32.mxu0 0.0
        %705 = vmatmul.mubr.f32.gmra.mrb[0].mxu0 %v605
        %v706 = vpop.f32.mrb[0].mxu0
        %v707 = vadd.f32 %v584, %v706
        %v708 = vpop.f32.mrb[0].mxu0
        %709 = vmatprep.mubr.f32.mxu0 0.0
        %710 = vmatmul.mubr.f32.gmra.mrb[0].mxu0 %v608
        %v711 = vpop.f32.mrb[0].mxu0
        %v712 = vadd.f32 %v584, %v711
        %v713 = vpop.f32.mrb[0].mxu0
        %714 = vdwg.mxu0
        %v715 = vmul.f32 %v677, 0.01
        %v716 = vmul.f32 %v682, 0.01
        %v717 = vmul.f32 %v687, 0.01
        %v718 = vmul.f32 %v692, 0.01
        %v719 = vmul.f32 %v697, 0.01
        %v720 = vmul.f32 %v702, 0.01
        %v721 = vmul.f32 %v707, 0.01
        %v722 = vmul.f32 %v712, 0.01
        %v723 = vmax.f32 %v677, %v715
        %v724 = vmax.f32 %v682, %v716
        %v725 = vmax.f32 %v687, %v717
        %v726 = vmax.f32 %v692, %v718
        %v727 = vmax.f32 %v697, %v719
        %v728 = vmax.f32 %v702, %v720
        %v729 = vmax.f32 %v707, %v721
        %v730 = vmax.f32 %v712, %v722
        %v731 = vld [vmem:[%s1] sm:$0xff]
        %v732 = vld [vmem:[%s1 + $0x8] sm:$0xff]
        %v733 = vld [vmem:[%s1 + $0x10] sm:$0xff]
        %v734 = vld [vmem:[%s1 + $0x18] sm:$0xff]
        %v735 = vld [vmem:[%s1 + $0x20] sm:$0xff]
        %v736 = vld [vmem:[%s1 + $0x28] sm:$0xff]
        %v737 = vld [vmem:[%s1 + $0x30] sm:$0xff]
        %v738 = vld [vmem:[%s1 + $0x38] sm:$0xff]
        %v739 = vmul.f32 %v723, %v731
        %v740 = vmul.f32 %v724, %v732
        %v741 = vmul.f32 %v725, %v733
        %v742 = vmul.f32 %v726, %v734
        %v743 = vmul.f32 %v727, %v735
        %v744 = vmul.f32 %v728, %v736
        %v745 = vmul.f32 %v729, %v737
        %v746 = vmul.f32 %v730, %v738
        %755 = vrot.lane.b32.xlu0 %v739, 96
        %v756 = vpop.permute.xlu0 %755
        %757 = vrot.lane.b32.xlu0 %v740, 96
        %v758 = vpop.permute.xlu0 %757
        %759 = vrot.lane.b32.xlu0 %v741, 96
        %v760 = vpop.permute.xlu0 %759
        %761 = vrot.lane.b32.xlu0 %v742, 96
        %v762 = vpop.permute.xlu0 %761
        %763 = vrot.lane.b32.xlu0 %v743, 96
        %v764 = vpop.permute.xlu0 %763
        %765 = vrot.lane.b32.xlu0 %v744, 96
        %v766 = vpop.permute.xlu0 %765
        %767 = vrot.lane.b32.xlu0 %v745, 96
        %v768 = vpop.permute.xlu0 %767
        %769 = vrot.lane.b32.xlu0 %v746, 96
        %v770 = vpop.permute.xlu0 %769
        %v779 = vadd.f32 %v739, %v756
        %v780 = vadd.f32 %v740, %v758
        %v781 = vadd.f32 %v741, %v760
        %v782 = vadd.f32 %v742, %v762
        %v783 = vadd.f32 %v743, %v764
        %v784 = vadd.f32 %v744, %v766
        %v785 = vadd.f32 %v745, %v768
        %v786 = vadd.f32 %v746, %v770
        %787 = vrot.lane.b32.xlu0 %v739, 64
        %v788 = vpop.permute.xlu0 %787
        %789 = vrot.lane.b32.xlu0 %v740, 64
        %v790 = vpop.permute.xlu0 %789
        %791 = vrot.lane.b32.xlu0 %v741, 64
        %v792 = vpop.permute.xlu0 %791
        %793 = vrot.lane.b32.xlu0 %v742, 64
        %v794 = vpop.permute.xlu0 %793
        %795 = vrot.lane.b32.xlu0 %v743, 64
        %v796 = vpop.permute.xlu0 %795
        %797 = vrot.lane.b32.xlu0 %v744, 64
        %v798 = vpop.permute.xlu0 %797
        %799 = vrot.lane.b32.xlu0 %v745, 64
        %v800 = vpop.permute.xlu0 %799
        %801 = vrot.lane.b32.xlu0 %v746, 64
        %v802 = vpop.permute.xlu0 %801
        %v811 = vadd.f32 %v779, %v788
        %v812 = vadd.f32 %v780, %v790
        %v813 = vadd.f32 %v781, %v792
        %v814 = vadd.f32 %v782, %v794
        %v815 = vadd.f32 %v783, %v796
        %v816 = vadd.f32 %v784, %v798
        %v817 = vadd.f32 %v785, %v800
        %v818 = vadd.f32 %v786, %v802
        %v819 = vld [vmem:[%s7] sm:$0x1]
        %820 = vset.pattern.permute.xlu0 0
        %821 = vperm.xlu0 %820, %v404
        %v822 = vpop.permute.xlu0 %821
        %824 = vset.pattern.permute.xlu0 0
        %825 = vperm.xlu0 %824, %v405
        %v826 = vpop.permute.xlu0 %825
        %828 = vset.pattern.permute.xlu0 0
        %829 = vperm.xlu0 %828, %v406
        %v830 = vpop.permute.xlu0 %829
        %832 = vset.pattern.permute.xlu0 0
        %833 = vperm.xlu0 %832, %v407
        %v834 = vpop.permute.xlu0 %833
        %836 = vset.pattern.permute.xlu0 0
        %837 = vperm.xlu0 %836, %v408
        %v838 = vpop.permute.xlu0 %837
        %840 = vset.pattern.permute.xlu0 0
        %841 = vperm.xlu0 %840, %v409
        %v842 = vpop.permute.xlu0 %841
        %844 = vset.pattern.permute.xlu0 0
        %845 = vperm.xlu0 %844, %v410
        %v846 = vpop.permute.xlu0 %845
        %848 = vset.pattern.permute.xlu0 0
        %849 = vperm.xlu0 %848, %v411
        %v850 = vpop.permute.xlu0 %849
        %v852 = vmul.f32 %v822, %v811
        %v853 = vmul.f32 %v826, %v812
        %v854 = vmul.f32 %v830, %v813
        %v855 = vmul.f32 %v834, %v814
        %v856 = vmul.f32 %v838, %v815
        %v857 = vmul.f32 %v842, %v816
        %v858 = vmul.f32 %v846, %v817
        %v859 = vmul.f32 %v850, %v818
        %vm860 = vcmask 261120
        %v861 = vsel %vm860, %v852, 0.0
        %v862 = vrot.slane %v861, 4
        %v863 = vadd.f32 %v861, %v862
        %v864 = vrot.slane %v863, 2
        %v865 = vadd.f32 %v863, %v864
        %v866 = vrot.slane %v865, 1
        %v867 = vadd.f32 %v865, %v866
        %v868 = vsel %vm860, %v853, 0.0
        %v869 = vrot.slane %v868, 4
        %v870 = vadd.f32 %v868, %v869
        %v871 = vrot.slane %v870, 2
        %v872 = vadd.f32 %v870, %v871
        %v873 = vrot.slane %v872, 1
        %v874 = vadd.f32 %v872, %v873
        %v875 = vsel %vm860, %v854, 0.0
        %v876 = vrot.slane %v875, 4
        %v877 = vadd.f32 %v875, %v876
        %v878 = vrot.slane %v877, 2
        %v879 = vadd.f32 %v877, %v878
        %v880 = vrot.slane %v879, 1
        %v881 = vadd.f32 %v879, %v880
        %v882 = vsel %vm860, %v855, 0.0
        %v883 = vrot.slane %v882, 4
        %v884 = vadd.f32 %v882, %v883
        %v885 = vrot.slane %v884, 2
        %v886 = vadd.f32 %v884, %v885
        %v887 = vrot.slane %v886, 1
        %v888 = vadd.f32 %v886, %v887
        %v889 = vsel %vm860, %v856, 0.0
        %v890 = vrot.slane %v889, 4
        %v891 = vadd.f32 %v889, %v890
        %v892 = vrot.slane %v891, 2
        %v893 = vadd.f32 %v891, %v892
        %v894 = vrot.slane %v893, 1
        %v895 = vadd.f32 %v893, %v894
        %v896 = vsel %vm860, %v857, 0.0
        %v897 = vrot.slane %v896, 4
        %v898 = vadd.f32 %v896, %v897
        %v899 = vrot.slane %v898, 2
        %v900 = vadd.f32 %v898, %v899
        %v901 = vrot.slane %v900, 1
        %v902 = vadd.f32 %v900, %v901
        %v903 = vsel %vm860, %v858, 0.0
        %v904 = vrot.slane %v903, 4
        %v905 = vadd.f32 %v903, %v904
        %v906 = vrot.slane %v905, 2
        %v907 = vadd.f32 %v905, %v906
        %v908 = vrot.slane %v907, 1
        %v909 = vadd.f32 %v907, %v908
        %v910 = vsel %vm860, %v859, 0.0
        %v911 = vrot.slane %v910, 4
        %v912 = vadd.f32 %v910, %v911
        %v913 = vrot.slane %v912, 2
        %v914 = vadd.f32 %v912, %v913
        %v915 = vrot.slane %v914, 1
        %v916 = vadd.f32 %v914, %v915
        %v917 = vld [vmem:[%s5] sm:$0xff]
        %v918 = vld [vmem:[%s5 + $0x8] sm:$0xff]
        %v919 = vld [vmem:[%s5 + $0x10] sm:$0xff]
        %v920 = vld [vmem:[%s5 + $0x18] sm:$0xff]
        %vm929 = vcmask 1041409
        %v930 = vsel %vm929, %v874, %v867
        %vm931 = vcmask 1042434
        %v932 = vsel %vm931, %v881, %v930
        %vm933 = vcmask 1043459
        %v934 = vsel %vm933, %v888, %v932
        %vm935 = vcmask 1044484
        %v936 = vsel %vm935, %v895, %v934
        %vm937 = vcmask 1045509
        %v938 = vsel %vm937, %v902, %v936
        %vm939 = vcmask 1046534
        %v940 = vsel %vm939, %v909, %v938
        %vm941 = vcmask 1047559
        %v942 = vsel %vm941, %v916, %v940
        %v943 = vsel %vm860, %v942, 0
        %945 = vmatprep.subr.mxu0 0.0
        %946 = vmatpush1.msra.mxu0 %v917
        %947 = vmatprep.subr.mxu0 0.0
        %948 = vmatpush1.msra.mxu0 %v918
        %949 = vmatprep.subr.mxu0 0.0
        %950 = vmatpush1.msra.mxu0 %v919
        %951 = vmatprep.subr.mxu0 0.0
        %952 = vmatpush1.msra.mxu0 %v920
        %953 = vmatprep.subr.mxu0 0.0
        %954 = vmatpush1.msra.mxu0 0.0
        %955 = vmatprep.subr.mxu0 0.0
        %956 = vmatpush1.msra.mxu0 0.0
        %957 = vmatprep.subr.mxu0 0.0
        %958 = vmatpush1.msra.mxu0 0.0
        %959 = vmatprep.subr.mxu0 0.0
        %960 = vmatpush1.msra.mxu0 0.0
        %961 = vmatprep.subr.mxu0 0.0
        %962 = vmatpush1.msra.mxu0 0.0
        %963 = vmatprep.subr.mxu0 0.0
        %964 = vmatpush1.msra.mxu0 0.0
        %965 = vmatprep.subr.mxu0 0.0
        %966 = vmatpush1.msra.mxu0 0.0
        %967 = vmatprep.subr.mxu0 0.0
        %968 = vmatpush1.msra.mxu0 0.0
        %969 = vmatprep.subr.mxu0 0.0
        %970 = vmatpush1.msra.mxu0 0.0
        %971 = vmatprep.subr.mxu0 0.0
        %972 = vmatpush1.msra.mxu0 0.0
        %973 = vmatprep.subr.mxu0 0.0
        %974 = vmatpush1.msra.mxu0 0.0
        %975 = vmatprep.subr.mxu0 0.0
        %976 = vmatpush1.msra.mxu0 0.0
        %977 = vmatprep.subr.mxu0 0.0
        %978 = vmatpush1.msra.mxu0 0.0
        %979 = vmatprep.subr.mxu0 0.0
        %980 = vmatpush1.msra.mxu0 0.0
        %981 = vmatprep.subr.mxu0 0.0
        %982 = vmatpush1.msra.mxu0 0.0
        %983 = vmatprep.subr.mxu0 0.0
        %984 = vmatpush1.msra.mxu0 0.0
        %985 = vmatprep.subr.mxu0 0.0
        %986 = vmatpush1.msra.mxu0 0.0
        %987 = vmatprep.subr.mxu0 0.0
        %988 = vmatpush1.msra.mxu0 0.0
        %989 = vmatprep.subr.mxu0 0.0
        %990 = vmatpush1.msra.mxu0 0.0
        %991 = vmatprep.subr.mxu0 0.0
        %992 = vmatpush1.msra.mxu0 0.0
        %993 = vmatprep.subr.mxu0 0.0
        %994 = vmatpush1.msra.mxu0 0.0
        %995 = vmatprep.subr.mxu0 0.0
        %996 = vmatpush1.msra.mxu0 0.0
        %997 = vmatprep.subr.mxu0 0.0
        %998 = vmatpush1.msra.mxu0 0.0
        %999 = vmatprep.subr.mxu0 0.0
        %1000 = vmatpush1.msra.mxu0 0.0
        %1001 = vmatprep.subr.mxu0 0.0
        %1002 = vmatpush1.msra.mxu0 0.0
        %1003 = vmatprep.subr.mxu0 0.0
        %1004 = vmatpush1.msra.mxu0 0.0
        %1005 = vmatprep.subr.mxu0 0.0
        %1006 = vmatpush1.msra.mxu0 0.0
        %1007 = vmatprep.subr.mxu0 0.0
        %1008 = vmatpush1.msra.mxu0 0.0
        %1009 = vmatprep.mubr.f32.mxu0 0.0
        %1010 = vmatmul.mubr.f32.gmra.mrb[0].mxu0 %v943
        %v1011 = vpop.f32.mrb[0].mxu0
        %v1012 = vadd.f32 0.0, %v1011
        %v1013 = vpop.f32.mrb[0].mxu0
        %1014 = vdwg.mxu0
        %v1015 = vlaneseq
        %v1016 = vshrl.u32 %v1015, 7
        %v1017 = vsub.s32 0, %v1016
        %v1018 = vrot.slane %v819, %v1017
        %v1019 = vadd.f32 %v1018, %v1012
        %1020 = vset.pattern.permute.xlu0 1
        %1021 = vperm.xlu0 %1020, %v404
        %v1022 = vpop.permute.xlu0 %1021
        %1024 = vset.pattern.permute.xlu0 1
        %1025 = vperm.xlu0 %1024, %v405
        %v1026 = vpop.permute.xlu0 %1025
        %1028 = vset.pattern.permute.xlu0 1
        %1029 = vperm.xlu0 %1028, %v406
        %v1030 = vpop.permute.xlu0 %1029
        %1032 = vset.pattern.permute.xlu0 1
        %1033 = vperm.xlu0 %1032, %v407
        %v1034 = vpop.permute.xlu0 %1033
        %1036 = vset.pattern.permute.xlu0 1
        %1037 = vperm.xlu0 %1036, %v408
        %v1038 = vpop.permute.xlu0 %1037
        %1040 = vset.pattern.permute.xlu0 1
        %1041 = vperm.xlu0 %1040, %v409
        %v1042 = vpop.permute.xlu0 %1041
        %1044 = vset.pattern.permute.xlu0 1
        %1045 = vperm.xlu0 %1044, %v410
        %v1046 = vpop.permute.xlu0 %1045
        %1048 = vset.pattern.permute.xlu0 1
        %1049 = vperm.xlu0 %1048, %v411
        %v1050 = vpop.permute.xlu0 %1049
        %v1052 = vmul.f32 %v1022, %v811
        %v1053 = vmul.f32 %v1026, %v812
        %v1054 = vmul.f32 %v1030, %v813
        %v1055 = vmul.f32 %v1034, %v814
        %v1056 = vmul.f32 %v1038, %v815
        %v1057 = vmul.f32 %v1042, %v816
        %v1058 = vmul.f32 %v1046, %v817
        %v1059 = vmul.f32 %v1050, %v818
        %v1060 = vsel %vm860, %v1052, 0.0
        %v1061 = vrot.slane %v1060, 4
        %v1062 = vadd.f32 %v1060, %v1061
        %v1063 = vrot.slane %v1062, 2
        %v1064 = vadd.f32 %v1062, %v1063
        %v1065 = vrot.slane %v1064, 1
        %v1066 = vadd.f32 %v1064, %v1065
        %v1067 = vsel %vm860, %v1053, 0.0
        %v1068 = vrot.slane %v1067, 4
        %v1069 = vadd.f32 %v1067, %v1068
        %v1070 = vrot.slane %v1069, 2
        %v1071 = vadd.f32 %v1069, %v1070
        %v1072 = vrot.slane %v1071, 1
        %v1073 = vadd.f32 %v1071, %v1072
        %v1074 = vsel %vm860, %v1054, 0.0
        %v1075 = vrot.slane %v1074, 4
        %v1076 = vadd.f32 %v1074, %v1075
        %v1077 = vrot.slane %v1076, 2
        %v1078 = vadd.f32 %v1076, %v1077
        %v1079 = vrot.slane %v1078, 1
        %v1080 = vadd.f32 %v1078, %v1079
        %v1081 = vsel %vm860, %v1055, 0.0
        %v1082 = vrot.slane %v1081, 4
        %v1083 = vadd.f32 %v1081, %v1082
        %v1084 = vrot.slane %v1083, 2
        %v1085 = vadd.f32 %v1083, %v1084
        %v1086 = vrot.slane %v1085, 1
        %v1087 = vadd.f32 %v1085, %v1086
        %v1088 = vsel %vm860, %v1056, 0.0
        %v1089 = vrot.slane %v1088, 4
        %v1090 = vadd.f32 %v1088, %v1089
        %v1091 = vrot.slane %v1090, 2
        %v1092 = vadd.f32 %v1090, %v1091
        %v1093 = vrot.slane %v1092, 1
        %v1094 = vadd.f32 %v1092, %v1093
        %v1095 = vsel %vm860, %v1057, 0.0
        %v1096 = vrot.slane %v1095, 4
        %v1097 = vadd.f32 %v1095, %v1096
        %v1098 = vrot.slane %v1097, 2
        %v1099 = vadd.f32 %v1097, %v1098
        %v1100 = vrot.slane %v1099, 1
        %v1101 = vadd.f32 %v1099, %v1100
        %v1102 = vsel %vm860, %v1058, 0.0
        %v1103 = vrot.slane %v1102, 4
        %v1104 = vadd.f32 %v1102, %v1103
        %v1105 = vrot.slane %v1104, 2
        %v1106 = vadd.f32 %v1104, %v1105
        %v1107 = vrot.slane %v1106, 1
        %v1108 = vadd.f32 %v1106, %v1107
        %v1109 = vsel %vm860, %v1059, 0.0
        %v1110 = vrot.slane %v1109, 4
        %v1111 = vadd.f32 %v1109, %v1110
        %v1112 = vrot.slane %v1111, 2
        %v1113 = vadd.f32 %v1111, %v1112
        %v1114 = vrot.slane %v1113, 1
        %v1115 = vadd.f32 %v1113, %v1114
        %s1116 = scalar_lea.vmem %s5, 32
        %v1117 = vld [vmem:[%s1116] sm:$0xff]
        %v1118 = vld [vmem:[%s1116 + $0x8] sm:$0xff]
        %v1119 = vld [vmem:[%s1116 + $0x10] sm:$0xff]
        %v1120 = vld [vmem:[%s1116 + $0x18] sm:$0xff]
        %v1129 = vsel %vm929, %v1073, %v1066
        %v1130 = vsel %vm931, %v1080, %v1129
        %v1131 = vsel %vm933, %v1087, %v1130
        %v1132 = vsel %vm935, %v1094, %v1131
        %v1133 = vsel %vm937, %v1101, %v1132
        %v1134 = vsel %vm939, %v1108, %v1133
        %v1135 = vsel %vm941, %v1115, %v1134
        %v1136 = vsel %vm860, %v1135, 0
        %1138 = vmatprep.subr.mxu0 0.0
        %1139 = vmatpush1.msra.mxu0 %v1117
        %1140 = vmatprep.subr.mxu0 0.0
        %1141 = vmatpush1.msra.mxu0 %v1118
        %1142 = vmatprep.subr.mxu0 0.0
        %1143 = vmatpush1.msra.mxu0 %v1119
        %1144 = vmatprep.subr.mxu0 0.0
        %1145 = vmatpush1.msra.mxu0 %v1120
        %1146 = vmatprep.subr.mxu0 0.0
        %1147 = vmatpush1.msra.mxu0 0.0
        %1148 = vmatprep.subr.mxu0 0.0
        %1149 = vmatpush1.msra.mxu0 0.0
        %1150 = vmatprep.subr.mxu0 0.0
        %1151 = vmatpush1.msra.mxu0 0.0
        %1152 = vmatprep.subr.mxu0 0.0
        %1153 = vmatpush1.msra.mxu0 0.0
        %1154 = vmatprep.subr.mxu0 0.0
        %1155 = vmatpush1.msra.mxu0 0.0
        %1156 = vmatprep.subr.mxu0 0.0
        %1157 = vmatpush1.msra.mxu0 0.0
        %1158 = vmatprep.subr.mxu0 0.0
        %1159 = vmatpush1.msra.mxu0 0.0
        %1160 = vmatprep.subr.mxu0 0.0
        %1161 = vmatpush1.msra.mxu0 0.0
        %1162 = vmatprep.subr.mxu0 0.0
        %1163 = vmatpush1.msra.mxu0 0.0
        %1164 = vmatprep.subr.mxu0 0.0
        %1165 = vmatpush1.msra.mxu0 0.0
        %1166 = vmatprep.subr.mxu0 0.0
        %1167 = vmatpush1.msra.mxu0 0.0
        %1168 = vmatprep.subr.mxu0 0.0
        %1169 = vmatpush1.msra.mxu0 0.0
        %1170 = vmatprep.subr.mxu0 0.0
        %1171 = vmatpush1.msra.mxu0 0.0
        %1172 = vmatprep.subr.mxu0 0.0
        %1173 = vmatpush1.msra.mxu0 0.0
        %1174 = vmatprep.subr.mxu0 0.0
        %1175 = vmatpush1.msra.mxu0 0.0
        %1176 = vmatprep.subr.mxu0 0.0
        %1177 = vmatpush1.msra.mxu0 0.0
        %1178 = vmatprep.subr.mxu0 0.0
        %1179 = vmatpush1.msra.mxu0 0.0
        %1180 = vmatprep.subr.mxu0 0.0
        %1181 = vmatpush1.msra.mxu0 0.0
        %1182 = vmatprep.subr.mxu0 0.0
        %1183 = vmatpush1.msra.mxu0 0.0
        %1184 = vmatprep.subr.mxu0 0.0
        %1185 = vmatpush1.msra.mxu0 0.0
        %1186 = vmatprep.subr.mxu0 0.0
        %1187 = vmatpush1.msra.mxu0 0.0
        %1188 = vmatprep.subr.mxu0 0.0
        %1189 = vmatpush1.msra.mxu0 0.0
        %1190 = vmatprep.subr.mxu0 0.0
        %1191 = vmatpush1.msra.mxu0 0.0
        %1192 = vmatprep.subr.mxu0 0.0
        %1193 = vmatpush1.msra.mxu0 0.0
        %1194 = vmatprep.subr.mxu0 0.0
        %1195 = vmatpush1.msra.mxu0 0.0
        %1196 = vmatprep.subr.mxu0 0.0
        %1197 = vmatpush1.msra.mxu0 0.0
        %1198 = vmatprep.subr.mxu0 0.0
        %1199 = vmatpush1.msra.mxu0 0.0
        %1200 = vmatprep.subr.mxu0 0.0
        %1201 = vmatpush1.msra.mxu0 0.0
        %1202 = vmatprep.mubr.f32.mxu0 0.0
        %1203 = vmatmul.mubr.f32.gmra.mrb[0].mxu0 %v1136
        %v1204 = vpop.f32.mrb[0].mxu0
        %v1205 = vadd.f32 0.0, %v1204
        %v1206 = vpop.f32.mrb[0].mxu0
        %1207 = vdwg.mxu0
        %v1208 = vadd.f32 %v1019, %v1205
        %1209 = vset.pattern.permute.xlu0 2
        %1210 = vperm.xlu0 %1209, %v404
        %v1211 = vpop.permute.xlu0 %1210
        %1213 = vset.pattern.permute.xlu0 2
        %1214 = vperm.xlu0 %1213, %v405
        %v1215 = vpop.permute.xlu0 %1214
        %1217 = vset.pattern.permute.xlu0 2
        %1218 = vperm.xlu0 %1217, %v406
        %v1219 = vpop.permute.xlu0 %1218
        %1221 = vset.pattern.permute.xlu0 2
        %1222 = vperm.xlu0 %1221, %v407
        %v1223 = vpop.permute.xlu0 %1222
        %1225 = vset.pattern.permute.xlu0 2
        %1226 = vperm.xlu0 %1225, %v408
        %v1227 = vpop.permute.xlu0 %1226
        %1229 = vset.pattern.permute.xlu0 2
        %1230 = vperm.xlu0 %1229, %v409
        %v1231 = vpop.permute.xlu0 %1230
        %1233 = vset.pattern.permute.xlu0 2
        %1234 = vperm.xlu0 %1233, %v410
        %v1235 = vpop.permute.xlu0 %1234
        %1237 = vset.pattern.permute.xlu0 2
        %1238 = vperm.xlu0 %1237, %v411
        %v1239 = vpop.permute.xlu0 %1238
        %v1241 = vmul.f32 %v1211, %v811
        %v1242 = vmul.f32 %v1215, %v812
        %v1243 = vmul.f32 %v1219, %v813
        %v1244 = vmul.f32 %v1223, %v814
        %v1245 = vmul.f32 %v1227, %v815
        %v1246 = vmul.f32 %v1231, %v816
        %v1247 = vmul.f32 %v1235, %v817
        %v1248 = vmul.f32 %v1239, %v818
        %v1249 = vsel %vm860, %v1241, 0.0
        %v1250 = vrot.slane %v1249, 4
        %v1251 = vadd.f32 %v1249, %v1250
        %v1252 = vrot.slane %v1251, 2
        %v1253 = vadd.f32 %v1251, %v1252
        %v1254 = vrot.slane %v1253, 1
        %v1255 = vadd.f32 %v1253, %v1254
        %v1256 = vsel %vm860, %v1242, 0.0
        %v1257 = vrot.slane %v1256, 4
        %v1258 = vadd.f32 %v1256, %v1257
        %v1259 = vrot.slane %v1258, 2
        %v1260 = vadd.f32 %v1258, %v1259
        %v1261 = vrot.slane %v1260, 1
        %v1262 = vadd.f32 %v1260, %v1261
        %v1263 = vsel %vm860, %v1243, 0.0
        %v1264 = vrot.slane %v1263, 4
        %v1265 = vadd.f32 %v1263, %v1264
        %v1266 = vrot.slane %v1265, 2
        %v1267 = vadd.f32 %v1265, %v1266
        %v1268 = vrot.slane %v1267, 1
        %v1269 = vadd.f32 %v1267, %v1268
        %v1270 = vsel %vm860, %v1244, 0.0
        %v1271 = vrot.slane %v1270, 4
        %v1272 = vadd.f32 %v1270, %v1271
        %v1273 = vrot.slane %v1272, 2
        %v1274 = vadd.f32 %v1272, %v1273
        %v1275 = vrot.slane %v1274, 1
        %v1276 = vadd.f32 %v1274, %v1275
        %v1277 = vsel %vm860, %v1245, 0.0
        %v1278 = vrot.slane %v1277, 4
        %v1279 = vadd.f32 %v1277, %v1278
        %v1280 = vrot.slane %v1279, 2
        %v1281 = vadd.f32 %v1279, %v1280
        %v1282 = vrot.slane %v1281, 1
        %v1283 = vadd.f32 %v1281, %v1282
        %v1284 = vsel %vm860, %v1246, 0.0
        %v1285 = vrot.slane %v1284, 4
        %v1286 = vadd.f32 %v1284, %v1285
        %v1287 = vrot.slane %v1286, 2
        %v1288 = vadd.f32 %v1286, %v1287
        %v1289 = vrot.slane %v1288, 1
        %v1290 = vadd.f32 %v1288, %v1289
        %v1291 = vsel %vm860, %v1247, 0.0
        %v1292 = vrot.slane %v1291, 4
        %v1293 = vadd.f32 %v1291, %v1292
        %v1294 = vrot.slane %v1293, 2
        %v1295 = vadd.f32 %v1293, %v1294
        %v1296 = vrot.slane %v1295, 1
        %v1297 = vadd.f32 %v1295, %v1296
        %v1298 = vsel %vm860, %v1248, 0.0
        %v1299 = vrot.slane %v1298, 4
        %v1300 = vadd.f32 %v1298, %v1299
        %v1301 = vrot.slane %v1300, 2
        %v1302 = vadd.f32 %v1300, %v1301
        %v1303 = vrot.slane %v1302, 1
        %v1304 = vadd.f32 %v1302, %v1303
        %s1305 = scalar_lea.vmem %s5, 64
        %v1306 = vld [vmem:[%s1305] sm:$0xff]
        %v1307 = vld [vmem:[%s1305 + $0x8] sm:$0xff]
        %v1308 = vld [vmem:[%s1305 + $0x10] sm:$0xff]
        %v1309 = vld [vmem:[%s1305 + $0x18] sm:$0xff]
        %v1318 = vsel %vm929, %v1262, %v1255
        %v1319 = vsel %vm931, %v1269, %v1318
        %v1320 = vsel %vm933, %v1276, %v1319
        %v1321 = vsel %vm935, %v1283, %v1320
        %v1322 = vsel %vm937, %v1290, %v1321
        %v1323 = vsel %vm939, %v1297, %v1322
        %v1324 = vsel %vm941, %v1304, %v1323
        %v1325 = vsel %vm860, %v1324, 0
        %1327 = vmatprep.subr.mxu0 0.0
        %1328 = vmatpush1.msra.mxu0 %v1306
        %1329 = vmatprep.subr.mxu0 0.0
        %1330 = vmatpush1.msra.mxu0 %v1307
        %1331 = vmatprep.subr.mxu0 0.0
        %1332 = vmatpush1.msra.mxu0 %v1308
        %1333 = vmatprep.subr.mxu0 0.0
        %1334 = vmatpush1.msra.mxu0 %v1309
        %1335 = vmatprep.subr.mxu0 0.0
        %1336 = vmatpush1.msra.mxu0 0.0
        %1337 = vmatprep.subr.mxu0 0.0
        %1338 = vmatpush1.msra.mxu0 0.0
        %1339 = vmatprep.subr.mxu0 0.0
        %1340 = vmatpush1.msra.mxu0 0.0
        %1341 = vmatprep.subr.mxu0 0.0
        %1342 = vmatpush1.msra.mxu0 0.0
        %1343 = vmatprep.subr.mxu0 0.0
        %1344 = vmatpush1.msra.mxu0 0.0
        %1345 = vmatprep.subr.mxu0 0.0
        %1346 = vmatpush1.msra.mxu0 0.0
        %1347 = vmatprep.subr.mxu0 0.0
        %1348 = vmatpush1.msra.mxu0 0.0
        %1349 = vmatprep.subr.mxu0 0.0
        %1350 = vmatpush1.msra.mxu0 0.0
        %1351 = vmatprep.subr.mxu0 0.0
        %1352 = vmatpush1.msra.mxu0 0.0
        %1353 = vmatprep.subr.mxu0 0.0
        %1354 = vmatpush1.msra.mxu0 0.0
        %1355 = vmatprep.subr.mxu0 0.0
        %1356 = vmatpush1.msra.mxu0 0.0
        %1357 = vmatprep.subr.mxu0 0.0
        %1358 = vmatpush1.msra.mxu0 0.0
        %1359 = vmatprep.subr.mxu0 0.0
        %1360 = vmatpush1.msra.mxu0 0.0
        %1361 = vmatprep.subr.mxu0 0.0
        %1362 = vmatpush1.msra.mxu0 0.0
        %1363 = vmatprep.subr.mxu0 0.0
        %1364 = vmatpush1.msra.mxu0 0.0
        %1365 = vmatprep.subr.mxu0 0.0
        %1366 = vmatpush1.msra.mxu0 0.0
        %1367 = vmatprep.subr.mxu0 0.0
        %1368 = vmatpush1.msra.mxu0 0.0
        %1369 = vmatprep.subr.mxu0 0.0
        %1370 = vmatpush1.msra.mxu0 0.0
        %1371 = vmatprep.subr.mxu0 0.0
        %1372 = vmatpush1.msra.mxu0 0.0
        %1373 = vmatprep.subr.mxu0 0.0
        %1374 = vmatpush1.msra.mxu0 0.0
        %1375 = vmatprep.subr.mxu0 0.0
        %1376 = vmatpush1.msra.mxu0 0.0
        %1377 = vmatprep.subr.mxu0 0.0
        %1378 = vmatpush1.msra.mxu0 0.0
        %1379 = vmatprep.subr.mxu0 0.0
        %1380 = vmatpush1.msra.mxu0 0.0
        %1381 = vmatprep.subr.mxu0 0.0
        %1382 = vmatpush1.msra.mxu0 0.0
        %1383 = vmatprep.subr.mxu0 0.0
        %1384 = vmatpush1.msra.mxu0 0.0
        %1385 = vmatprep.subr.mxu0 0.0
        %1386 = vmatpush1.msra.mxu0 0.0
        %1387 = vmatprep.subr.mxu0 0.0
        %1388 = vmatpush1.msra.mxu0 0.0
        %1389 = vmatprep.subr.mxu0 0.0
        %1390 = vmatpush1.msra.mxu0 0.0
        %1391 = vmatprep.mubr.f32.mxu0 0.0
        %1392 = vmatmul.mubr.f32.gmra.mrb[0].mxu0 %v1325
        %v1393 = vpop.f32.mrb[0].mxu0
        %v1394 = vadd.f32 0.0, %v1393
        %v1395 = vpop.f32.mrb[0].mxu0
        %1396 = vdwg.mxu0
        %v1397 = vadd.f32 %v1208, %v1394
        %v1398 = vmul.f32 %v1397, 0.01
        %v1399 = vmax.f32 %v1397, %v1398
        %v1400 = vld [vmem:[#allocation4] sm:$0xff]
        %v1401 = vld [vmem:[#allocation4 + $0x8] sm:$0xff]
        %v1402 = vld [vmem:[#allocation4 + $0x10] sm:$0xff]
        %v1403 = vld [vmem:[#allocation4 + $0x18] sm:$0xff]
        %v1404 = vld [vmem:[%s7 + $0x1] sm:$0x1]
        %v1405 = vlaneseq
        %v1406 = vshrl.u32 %v1405, 7
        %v1407 = vsub.s32 0, %v1406
        %v1408 = vrot.slane %v1404, %v1407
        %v1410 = vsel %vm860, %v1399, 0
        %1412 = vmatprep.subr.mxu0 0.0
        %1413 = vmatpush1.msra.mxu0 %v1400
        %1414 = vmatprep.subr.mxu0 0.0
        %1415 = vmatpush1.msra.mxu0 %v1401
        %1416 = vmatprep.subr.mxu0 0.0
        %1417 = vmatpush1.msra.mxu0 %v1402
        %1418 = vmatprep.subr.mxu0 0.0
        %1419 = vmatpush1.msra.mxu0 %v1403
        %1420 = vmatprep.subr.mxu0 0.0
        %1421 = vmatpush1.msra.mxu0 0.0
        %1422 = vmatprep.subr.mxu0 0.0
        %1423 = vmatpush1.msra.mxu0 0.0
        %1424 = vmatprep.subr.mxu0 0.0
        %1425 = vmatpush1.msra.mxu0 0.0
        %1426 = vmatprep.subr.mxu0 0.0
        %1427 = vmatpush1.msra.mxu0 0.0
        %1428 = vmatprep.subr.mxu0 0.0
        %1429 = vmatpush1.msra.mxu0 0.0
        %1430 = vmatprep.subr.mxu0 0.0
        %1431 = vmatpush1.msra.mxu0 0.0
        %1432 = vmatprep.subr.mxu0 0.0
        %1433 = vmatpush1.msra.mxu0 0.0
        %1434 = vmatprep.subr.mxu0 0.0
        %1435 = vmatpush1.msra.mxu0 0.0
        %1436 = vmatprep.subr.mxu0 0.0
        %1437 = vmatpush1.msra.mxu0 0.0
        %1438 = vmatprep.subr.mxu0 0.0
        %1439 = vmatpush1.msra.mxu0 0.0
        %1440 = vmatprep.subr.mxu0 0.0
        %1441 = vmatpush1.msra.mxu0 0.0
        %1442 = vmatprep.subr.mxu0 0.0
        %1443 = vmatpush1.msra.mxu0 0.0
        %1444 = vmatprep.subr.mxu0 0.0
        %1445 = vmatpush1.msra.mxu0 0.0
        %1446 = vmatprep.subr.mxu0 0.0
        %1447 = vmatpush1.msra.mxu0 0.0
        %1448 = vmatprep.subr.mxu0 0.0
        %1449 = vmatpush1.msra.mxu0 0.0
        %1450 = vmatprep.subr.mxu0 0.0
        %1451 = vmatpush1.msra.mxu0 0.0
        %1452 = vmatprep.subr.mxu0 0.0
        %1453 = vmatpush1.msra.mxu0 0.0
        %1454 = vmatprep.subr.mxu0 0.0
        %1455 = vmatpush1.msra.mxu0 0.0
        %1456 = vmatprep.subr.mxu0 0.0
        %1457 = vmatpush1.msra.mxu0 0.0
        %1458 = vmatprep.subr.mxu0 0.0
        %1459 = vmatpush1.msra.mxu0 0.0
        %1460 = vmatprep.subr.mxu0 0.0
        %1461 = vmatpush1.msra.mxu0 0.0
        %1462 = vmatprep.subr.mxu0 0.0
        %1463 = vmatpush1.msra.mxu0 0.0
        %1464 = vmatprep.subr.mxu0 0.0
        %1465 = vmatpush1.msra.mxu0 0.0
        %1466 = vmatprep.subr.mxu0 0.0
        %1467 = vmatpush1.msra.mxu0 0.0
        %1468 = vmatprep.subr.mxu0 0.0
        %1469 = vmatpush1.msra.mxu0 0.0
        %1470 = vmatprep.subr.mxu0 0.0
        %1471 = vmatpush1.msra.mxu0 0.0
        %1472 = vmatprep.subr.mxu0 0.0
        %1473 = vmatpush1.msra.mxu0 0.0
        %1474 = vmatprep.subr.mxu0 0.0
        %1475 = vmatpush1.msra.mxu0 0.0
        %1476 = vmatprep.mubr.f32.mxu0 0.0
        %1477 = vmatmul.mubr.f32.gmra.mrb[0].mxu0 %v1410
        %v1478 = vpop.f32.mrb[0].mxu0
        %v1479 = vadd.f32 %v1408, %v1478
        %v1480 = vpop.f32.mrb[0].mxu0
        %1481 = vdwg.mxu0
        %v1482 = vmul.f32 %v1479, 0.01
        %v1483 = vmax.f32 %v1479, %v1482
        %v1484 = vld [vmem:[#allocation6] sm:$0xff]
        %v1485 = vld [vmem:[#allocation6 + $0x8] sm:$0xff]
        %v1486 = vld [vmem:[#allocation6 + $0x10] sm:$0xff]
        %v1487 = vld [vmem:[#allocation6 + $0x18] sm:$0xff]
        %v1488 = vld [vmem:[%s9] sm:$0x1]
        %v1490 = vlaneseq
        %v1491 = vshrl.u32 %v1490, 7
        %v1492 = vsub.s32 0, %v1491
        %v1493 = vrot.slane %v1488, %v1492
        %v1496 = vsel %vm860, %v1483, 0
        %1498 = vmatprep.subr.mxu0 0.0
        %1499 = vmatpush1.msra.mxu0 %v1484
        %1500 = vmatprep.subr.mxu0 0.0
        %1501 = vmatpush1.msra.mxu0 %v1485
        %1502 = vmatprep.subr.mxu0 0.0
        %1503 = vmatpush1.msra.mxu0 %v1486
        %1504 = vmatprep.subr.mxu0 0.0
        %1505 = vmatpush1.msra.mxu0 %v1487
        %1506 = vmatprep.subr.mxu0 0.0
        %1507 = vmatpush1.msra.mxu0 0.0
        %1508 = vmatprep.subr.mxu0 0.0
        %1509 = vmatpush1.msra.mxu0 0.0
        %1510 = vmatprep.subr.mxu0 0.0
        %1511 = vmatpush1.msra.mxu0 0.0
        %1512 = vmatprep.subr.mxu0 0.0
        %1513 = vmatpush1.msra.mxu0 0.0
        %1514 = vmatprep.subr.mxu0 0.0
        %1515 = vmatpush1.msra.mxu0 0.0
        %1516 = vmatprep.subr.mxu0 0.0
        %1517 = vmatpush1.msra.mxu0 0.0
        %1518 = vmatprep.subr.mxu0 0.0
        %1519 = vmatpush1.msra.mxu0 0.0
        %1520 = vmatprep.subr.mxu0 0.0
        %1521 = vmatpush1.msra.mxu0 0.0
        %1522 = vmatprep.subr.mxu0 0.0
        %1523 = vmatpush1.msra.mxu0 0.0
        %1524 = vmatprep.subr.mxu0 0.0
        %1525 = vmatpush1.msra.mxu0 0.0
        %1526 = vmatprep.subr.mxu0 0.0
        %1527 = vmatpush1.msra.mxu0 0.0
        %1528 = vmatprep.subr.mxu0 0.0
        %1529 = vmatpush1.msra.mxu0 0.0
        %1530 = vmatprep.subr.mxu0 0.0
        %1531 = vmatpush1.msra.mxu0 0.0
        %1532 = vmatprep.subr.mxu0 0.0
        %1533 = vmatpush1.msra.mxu0 0.0
        %1534 = vmatprep.subr.mxu0 0.0
        %1535 = vmatpush1.msra.mxu0 0.0
        %1536 = vmatprep.subr.mxu0 0.0
        %1537 = vmatpush1.msra.mxu0 0.0
        %1538 = vmatprep.subr.mxu0 0.0
        %1539 = vmatpush1.msra.mxu0 0.0
        %1540 = vmatprep.subr.mxu0 0.0
        %1541 = vmatpush1.msra.mxu0 0.0
        %1542 = vmatprep.subr.mxu0 0.0
        %1543 = vmatpush1.msra.mxu0 0.0
        %1544 = vmatprep.subr.mxu0 0.0
        %1545 = vmatpush1.msra.mxu0 0.0
        %1546 = vmatprep.subr.mxu0 0.0
        %1547 = vmatpush1.msra.mxu0 0.0
        %1548 = vmatprep.subr.mxu0 0.0
        %1549 = vmatpush1.msra.mxu0 0.0
        %1550 = vmatprep.subr.mxu0 0.0
        %1551 = vmatpush1.msra.mxu0 0.0
        %1552 = vmatprep.subr.mxu0 0.0
        %1553 = vmatpush1.msra.mxu0 0.0
        %1554 = vmatprep.subr.mxu0 0.0
        %1555 = vmatpush1.msra.mxu0 0.0
        %1556 = vmatprep.subr.mxu0 0.0
        %1557 = vmatpush1.msra.mxu0 0.0
        %1558 = vmatprep.subr.mxu0 0.0
        %1559 = vmatpush1.msra.mxu0 0.0
        %1560 = vmatprep.subr.mxu0 0.0
        %1561 = vmatpush1.msra.mxu0 0.0
        %1562 = vmatprep.mubr.f32.mxu0 0.0
        %1563 = vmatmul.mubr.f32.gmra.mrb[0].mxu0 %v1496
        %v1564 = vpop.f32.mrb[0].mxu0
        %v1565 = vadd.f32 %v1493, %v1564
        %v1566 = vpop.f32.mrb[0].mxu0
        %1567 = vdwg.mxu0
        %1568 = vst.msk [vmem:[%s403] sm:$0xff] %vm418, %v1565
        %p1569 = scmp.lt.s32.totalorder %s23, 1
        %s1570 = scalar_select %p1569, %s23, 1
        %s1571 = smul.addr %s1570, 8
        %s1572 = scalar_lea.vmem %s10, %s1571
        // Predicated region
        $region73: #{forward_batch.1} parent=59 // pred_check
          %p1573 = pneg %p256
        $region74: #{forward_batch.1} parent=59 // pred_check_branch
          %1575 = sbr.rel (%p1573) target = $region76
        $region75: #{forward_batch.1} parent=59 // pred_region
          _
        $region76: #{forward_batch.1} parent=59 // pred_fallthru
          _
      $region60: #{forward_batch.1} parent=5 // pred_fallthru
        _
      %p1576 = scmp.le.s32.totalorder 2, %s18
      // Predicated region
      $region77: #{forward_batch.1} parent=5 // pred_check
        %p1577 = pneg %p1576
      $region78: #{forward_batch.1} parent=5 // pred_check_branch
        %1579 = sbr.rel (%p1577) target = $region80
      $region79: #{forward_batch.1} parent=5 // pred_region
        %s1580 = ssub.s32 %s18, 2
        // Predicated region
        $region81: #{forward_batch.1} parent=79 // pred_check
          %p1581 = pneg %p262
        $region82: #{forward_batch.1} parent=79 // pred_check_branch
          %1583 = sbr.rel (%p1581) target = $region84
        $region83: #{forward_batch.1} parent=79 // pred_region
          %p1584 = scmp.lt.s32.totalorder %s24, 1
          %s1585 = scalar_select %p1584, %s24, 1
          %s1586 = smul.addr %s1585, 8
          %s1587 = scalar_lea.vmem %s10, %s1586
        $region84: #{forward_batch.1} parent=79 // pred_fallthru
          _
      $region80: #{forward_batch.1} parent=5 // pred_fallthru
        _
    $region6: #{forward_batch.1} parent=1 // loop_footer
      %s22 = sadd.s32 1, %s18
    $region7: #{forward_batch.1} parent=1 // loop_footer_branch
      %17 = sbr.rel target = $region3
    $region8: #{forward_batch.1} parent=1 // loop_exit
      _
    %1588 = vsyncpa [#allocation3], 1
    %s1589 = scalar_lea.sflag [#allocation3], 1
    %1590 = vsyncpa %s1589, 1
    %1591 = vsyncpa [#allocation5], 1

</llo_original>
